<compile_context>
chip_gen: v7x
topology: tpu7x:2x2x1
jax: 0.10.0
libtpu: 0.0.40
codegen_flags: <defaults>
</compile_context>

<pallas_src>
import jax
import jax.numpy as jnp
from jax.experimental import pallas as pl
from jax.experimental.pallas import tpu as pltpu


def _round_up(x, m):
    return (x + m - 1) // m * m


def _pack_gate_weight(w, in_pad, h_pad):
    """PyTorch-stacked (4H, in_dim) gate weights [i,f,g,o] -> lane-aligned (in_pad, 4*h_pad).

    Gate g occupies columns [g*h_pad : g*h_pad + H]; padding columns/rows are zero,
    which keeps the padded hidden lanes exactly zero through the recurrence.
    """
    four_h, in_dim = w.shape
    h = four_h // 4
    w4 = jnp.transpose(w.reshape(4, h, in_dim), (0, 2, 1))            # (4, in, H)
    w4 = jnp.pad(w4, ((0, 0), (0, in_pad - in_dim), (0, h_pad - h)))  # (4, in_pad, h_pad)
    w4 = jnp.transpose(w4, (1, 0, 2))                                 # (in_pad, 4, h_pad)
    return w4.reshape(in_pad, 4 * h_pad)


def lstm_fc_kernel(emb_ref, wih_ref, whh_ref, b_ref, wfc_ref, bfc_ref,
                   out_ref, pre_ref):
    """Fused LSTM (PyTorch gate order i,f,g,o) + final Linear.

    emb_ref : (T*B, E_pad)      bf16  time-major, batch-padded embedded inputs
    wih_ref : (E_pad, 4*H_pad)  bf16  lane-aligned-per-gate W_ih^T
    whh_ref : (H_pad, 4*H_pad)  bf16  lane-aligned-per-gate W_hh^T
    b_ref   : (1, 4*H_pad)      f32   b_ih + b_hh (zero-padded per gate)
    wfc_ref : (H_pad, O_pad)    bf16  W_fc^T
    bfc_ref : (1, O_pad)        f32
    out_ref : (B_pad, O_pad)    f32
    pre_ref : (T, B_pad, 4*H_pad) f32 VMEM scratch for the hoisted input projection
    """
    T, B, H4 = pre_ref.shape
    H = whh_ref.shape[0]

    # (1) Hoisted input projection: ONE big MXU matmul, bias folded in once.
    pre = (jnp.dot(emb_ref[...], wih_ref[...], preferred_element_type=jnp.float32)
           + b_ref[...])
    pre_ref[...] = pre.reshape(T, B, H4)

    whh = whh_ref[...]
    h0 = jnp.zeros((B, H), jnp.float32)
    c0 = jnp.zeros((B, H), jnp.float32)

    def step(t, carry):
        h, c = carry
        # Only the serial part remains on the critical path: h @ W_hh.
        # TODO(synk): for very long T, pltpu.matmul_push_rhs/acc_lhs could keep
        # W_hh resident in the MXU weight registers across steps.
        gates = pre_ref[t] + jnp.dot(h.astype(whh.dtype), whh,
                                     preferred_element_type=jnp.float32)
        # H is padded to a multiple of 128, so these slices are lane-aligned.
        i_g = jax.nn.sigmoid(gates[:, 0:H])
        f_g = jax.nn.sigmoid(gates[:, H:2 * H])
        g_g = jnp.tanh(gates[:, 2 * H:3 * H])
        o_g = jax.nn.sigmoid(gates[:, 3 * H:4 * H])
        c_new = f_g * c + i_g * g_g          # f32 elementwise (v5e-friendly)
        h_new = o_g * jnp.tanh(c_new)
        return (h_new, c_new)

    # (2) Fully unrolled recurrence so adjacent steps' MXU/EUP/VPU work interleaves.
    h_last, _ = jax.lax.fori_loop(0, T, step, (h0, c0), unroll=True)

    # (3) Lane-dense (O padded to 128) output store -> unmasked vst.
    out_ref[...] = (jnp.dot(h_last.astype(wfc_ref.dtype), wfc_ref[...],
                            preferred_element_type=jnp.float32)
                    + bfc_ref[...])


def lstm_model_forward(tokens, params):
    """tokens: (B, T) int32 token ids.  Returns (B, output_dim) f32 logits."""
    emb_table = params["embedding"]               # (V, E)
    w_ih, w_hh = params["w_ih"], params["w_hh"]   # (4H, E), (4H, H)
    b_ih, b_hh = params["b_ih"], params["b_hh"]   # (4H,), (4H,)
    w_fc, b_fc = params["w_fc"], params["b_fc"]   # (O, H), (O,)

    B, T = tokens.shape
    E = emb_table.shape[1]
    H = w_hh.shape[1]
    O = w_fc.shape[0]

    B_pad = _round_up(B, 8)        # f32 sublane multiple
    E_pad = _round_up(E, 128)
    H_pad = _round_up(H, 128)      # lane-aligned gate blocks
    O_pad = _round_up(O, 128)      # lane-dense output store

    # Embedding lookup (gather) + layout in plain JAX.
    # NOTE: jnp.take clips out-of-range ids; PyTorch would raise.
    embedded = jnp.take(emb_table, tokens, axis=0)            # (B, T, E)
    emb_tbe = jnp.transpose(embedded, (1, 0, 2))              # (T, B, E) time-major
    emb_tbe = jnp.pad(emb_tbe, ((0, 0), (0, B_pad - B), (0, E_pad - E)))
    emb2d = emb_tbe.reshape(T * B_pad, E_pad).astype(jnp.bfloat16)

    wih = _pack_gate_weight(w_ih, E_pad, H_pad).astype(jnp.bfloat16)
    whh = _pack_gate_weight(w_hh, H_pad, H_pad).astype(jnp.bfloat16)
    b = jnp.pad((b_ih + b_hh).reshape(4, H), ((0, 0), (0, H_pad - H)))
    b = b.reshape(1, 4 * H_pad).astype(jnp.float32)
    wfc = jnp.pad(jnp.transpose(w_fc), ((0, H_pad - H), (0, O_pad - O))).astype(jnp.bfloat16)
    bfc = jnp.pad(b_fc, (0, O_pad - O)).reshape(1, O_pad).astype(jnp.float32)

    # Single no-grid call: everything fits VMEM at these sizes (v6e-style residency).
    # TODO(synk): for large T/B on v7x (64 MiB VMEM), add a time-chunk grid with
    # h/c carried in scratch + a "parallel" batch-block axis for megacore.
    vmem = pl.BlockSpec(memory_space=pltpu.MemorySpace.VMEM)
    out_pad = pl.pallas_call(
        lstm_fc_kernel,
        out_shape=jax.ShapeDtypeStruct((B_pad, O_pad), jnp.float32),
        in_specs=[vmem] * 6,
        out_specs=vmem,
        scratch_shapes=[pltpu.VMEM((T, B_pad, 4 * H_pad), jnp.float32)],
    )(emb2d, wih, whh, b, wfc, bfc)

    return out_pad[:B, :O]


def init_params(key, vocab_size, embedding_dim, hidden_dim, output_dim):
    ks = jax.random.split(key, 7)
    s = 0.1
    return {
        "embedding": s * jax.random.normal(ks[0], (vocab_size, embedding_dim), jnp.float32),
        "w_ih": s * jax.random.normal(ks[1], (4 * hidden_dim, embedding_dim), jnp.float32),
        "w_hh": s * jax.random.normal(ks[2], (4 * hidden_dim, hidden_dim), jnp.float32),
        "b_ih": s * jax.random.normal(ks[3], (4 * hidden_dim,), jnp.float32),
        "b_hh": s * jax.random.normal(ks[4], (4 * hidden_dim,), jnp.float32),
        "w_fc": s * jax.random.normal(ks[5], (output_dim, hidden_dim), jnp.float32),
        "b_fc": s * jax.random.normal(ks[6], (output_dim,), jnp.float32),
    }


if __name__ == "__main__":
    # Small shapes consistent with the module (embedding_dim=50, hidden_dim=100).
    batch, seq_len = 2, 8
    vocab_size, embedding_dim, hidden_dim, output_dim = 64, 50, 100, 4

    key = jax.random.PRNGKey(0)
    pkey, xkey = jax.random.split(key)
    params = init_params(pkey, vocab_size, embedding_dim, hidden_dim, output_dim)
    tokens = jax.random.randint(xkey, (batch, seq_len), 0, vocab_size, dtype=jnp.int32)

    logits = lstm_model_forward(tokens, params)
    jax.block_until_ready(logits)
    assert logits.shape == (batch, output_dim)
    assert bool(jnp.all(jnp.isfinite(logits)))
    print("KERNEL_OK")
</pallas_src>

<mosaic_0001>
module attributes {stable_mosaic.version = 11 : i64} {
  func.func @lstm_fc_kernel(%arg0: memref<64x128xbf16, #tpu.memory_space<vmem>>, %arg1: memref<128x512xbf16, #tpu.memory_space<vmem>>, %arg2: memref<128x512xbf16, #tpu.memory_space<vmem>>, %arg3: memref<1x512xf32, #tpu.memory_space<vmem>>, %arg4: memref<128x128xbf16, #tpu.memory_space<vmem>>, %arg5: memref<1x128xf32, #tpu.memory_space<vmem>>, %arg6: memref<8x128xf32, #tpu.memory_space<vmem>>, %arg7: memref<8x8x512xf32, #tpu.memory_space<vmem>>) attributes {dimension_semantics = [], scalar_prefetch = 0 : i64, scratch_operands = 1 : i64, tpu.core_type = #tpu.core_type<tc>} {
    %c0 = arith.constant 0 : index
    %c0_0 = arith.constant 0 : index
    %0 = vector.load %arg0[%c0, %c0_0] : memref<64x128xbf16, #tpu.memory_space<vmem>>, vector<64x128xbf16>
    %c0_1 = arith.constant 0 : index
    %c0_2 = arith.constant 0 : index
    %1 = vector.load %arg1[%c0_1, %c0_2] : memref<128x512xbf16, #tpu.memory_space<vmem>>, vector<128x512xbf16>
    %cst = arith.constant dense<0.000000e+00> : vector<64x512xf32>
    %2 = tpu.matmul %0, %1, %cst {dimension_numbers = #tpu.dot_dimension_numbers<[1], [0], [0], [1], [0, 0, 1, 1], [], []>} : vector<64x128xbf16>, vector<128x512xbf16>, vector<64x512xf32> -> vector<64x512xf32>
    %c0_3 = arith.constant 0 : index
    %c0_4 = arith.constant 0 : index
    %3 = vector.load %arg3[%c0_3, %c0_4] : memref<1x512xf32, #tpu.memory_space<vmem>>, vector<1x512xf32>
    %4 = vector.broadcast %3 : vector<1x512xf32> to vector<64x512xf32>
    %5 = arith.addf %2, %4 : vector<64x512xf32>
    %6 = vector.shape_cast %5 : vector<64x512xf32> to vector<8x8x512xf32>
    %c0_5 = arith.constant 0 : index
    %c0_6 = arith.constant 0 : index
    %c0_7 = arith.constant 0 : index
    %7 = vector.load %arg7[%c0_5, %c0_6, %c0_7] : memref<8x8x512xf32, #tpu.memory_space<vmem>>, vector<8x8x512xf32>
    tpu.vector_store %arg7[%c0_5, %c0_6, %c0_7], %6 {strides = array<i32>} : memref<8x8x512xf32, #tpu.memory_space<vmem>>, vector<8x8x512xf32>,
    %c0_8 = arith.constant 0 : index
    %c0_9 = arith.constant 0 : index
    %8 = vector.load %arg2[%c0_8, %c0_9] : memref<128x512xbf16, #tpu.memory_space<vmem>>, vector<128x512xbf16>
    %cst_10 = arith.constant 0.000000e+00 : f32
    %9 = vector.broadcast %cst_10 : f32 to vector<8x128xf32>
    %cst_11 = arith.constant 0.000000e+00 : f32
    %10 = vector.broadcast %cst_11 : f32 to vector<8x128xf32>
    %c0_i32 = arith.constant 0 : i32
    %11 = arith.index_cast %c0_i32 : i32 to index
    %c0_12 = arith.constant 0 : index
    %c0_13 = arith.constant 0 : index
    %12 = vector.load %arg7[%11, %c0_12, %c0_13] : memref<8x8x512xf32, #tpu.memory_space<vmem>>, vector<1x8x512xf32>
    %13 = vector.shape_cast %12 : vector<1x8x512xf32> to vector<8x512xf32>
    %14 = arith.truncf %9 : vector<8x128xf32> to vector<8x128xbf16>
    %cst_14 = arith.constant dense<0.000000e+00> : vector<8x512xf32>
    %15 = tpu.matmul %14, %8, %cst_14 {dimension_numbers = #tpu.dot_dimension_numbers<[1], [0], [0], [1], [0, 0, 1, 1], [], []>} : vector<8x128xbf16>, vector<128x512xbf16>, vector<8x512xf32> -> vector<8x512xf32>
    %16 = arith.addf %13, %15 : vector<8x512xf32>
    %17 = vector.extract_strided_slice %16 {offsets = [0, 0], sizes = [8, 128], strides = [1, 1]} : vector<8x512xf32> to vector<8x128xf32>
    %18 = arith.negf %17 : vector<8x128xf32>
    %19 = math.exp %18 : vector<8x128xf32>
    %cst_15 = arith.constant 1.000000e+00 : f32
    %20 = vector.broadcast %cst_15 : f32 to vector<8x128xf32>
    %21 = arith.addf %20, %19 : vector<8x128xf32>
    %22 = arith.divf %20, %21 : vector<8x128xf32>
    %23 = vector.extract_strided_slice %16 {offsets = [0, 128], sizes = [8, 128], strides = [1, 1]} : vector<8x512xf32> to vector<8x128xf32>
    %24 = arith.negf %23 : vector<8x128xf32>
    %25 = math.exp %24 : vector<8x128xf32>
    %cst_16 = arith.constant 1.000000e+00 : f32
    %26 = vector.broadcast %cst_16 : f32 to vector<8x128xf32>
    %27 = arith.addf %26, %25 : vector<8x128xf32>
    %28 = arith.divf %26, %27 : vector<8x128xf32>
    %29 = vector.extract_strided_slice %16 {offsets = [0, 256], sizes = [8, 128], strides = [1, 1]} : vector<8x512xf32> to vector<8x128xf32>
    %30 = math.tanh %29 : vector<8x128xf32>
    %31 = vector.extract_strided_slice %16 {offsets = [0, 384], sizes = [8, 128], strides = [1, 1]} : vector<8x512xf32> to vector<8x128xf32>
    %32 = arith.negf %31 : vector<8x128xf32>
    %33 = math.exp %32 : vector<8x128xf32>
    %cst_17 = arith.constant 1.000000e+00 : f32
    %34 = vector.broadcast %cst_17 : f32 to vector<8x128xf32>
    %35 = arith.addf %34, %33 : vector<8x128xf32>
    %36 = arith.divf %34, %35 : vector<8x128xf32>
    %37 = arith.mulf %28, %10 : vector<8x128xf32>
    %38 = arith.mulf %22, %30 : vector<8x128xf32>
    %39 = arith.addf %37, %38 : vector<8x128xf32>
    %40 = math.tanh %39 : vector<8x128xf32>
    %41 = arith.mulf %36, %40 : vector<8x128xf32>
    %c1_i32 = arith.constant 1 : i32
    %42 = arith.index_cast %c1_i32 : i32 to index
    %c0_18 = arith.constant 0 : index
    %c0_19 = arith.constant 0 : index
    %43 = vector.load %arg7[%42, %c0_18, %c0_19] : memref<8x8x512xf32, #tpu.memory_space<vmem>>, vector<1x8x512xf32>
    %44 = vector.shape_cast %43 : vector<1x8x512xf32> to vector<8x512xf32>
    %45 = arith.truncf %41 : vector<8x128xf32> to vector<8x128xbf16>
    %cst_20 = arith.constant dense<0.000000e+00> : vector<8x512xf32>
    %46 = tpu.matmul %45, %8, %cst_20 {dimension_numbers = #tpu.dot_dimension_numbers<[1], [0], [0], [1], [0, 0, 1, 1], [], []>} : vector<8x128xbf16>, vector<128x512xbf16>, vector<8x512xf32> -> vector<8x512xf32>
    %47 = arith.addf %44, %46 : vector<8x512xf32>
    %48 = vector.extract_strided_slice %47 {offsets = [0, 0], sizes = [8, 128], strides = [1, 1]} : vector<8x512xf32> to vector<8x128xf32>
    %49 = arith.negf %48 : vector<8x128xf32>
    %50 = math.exp %49 : vector<8x128xf32>
    %cst_21 = arith.constant 1.000000e+00 : f32
    %51 = vector.broadcast %cst_21 : f32 to vector<8x128xf32>
    %52 = arith.addf %51, %50 : vector<8x128xf32>
    %53 = arith.divf %51, %52 : vector<8x128xf32>
    %54 = vector.extract_strided_slice %47 {offsets = [0, 128], sizes = [8, 128], strides = [1, 1]} : vector<8x512xf32> to vector<8x128xf32>
    %55 = arith.negf %54 : vector<8x128xf32>
    %56 = math.exp %55 : vector<8x128xf32>
    %cst_22 = arith.constant 1.000000e+00 : f32
    %57 = vector.broadcast %cst_22 : f32 to vector<8x128xf32>
    %58 = arith.addf %57, %56 : vector<8x128xf32>
    %59 = arith.divf %57, %58 : vector<8x128xf32>
    %60 = vector.extract_strided_slice %47 {offsets = [0, 256], sizes = [8, 128], strides = [1, 1]} : vector<8x512xf32> to vector<8x128xf32>
    %61 = math.tanh %60 : vector<8x128xf32>
    %62 = vector.extract_strided_slice %47 {offsets = [0, 384], sizes = [8, 128], strides = [1, 1]} : vector<8x512xf32> to vector<8x128xf32>
    %63 = arith.negf %62 : vector<8x128xf32>
    %64 = math.exp %63 : vector<8x128xf32>
    %cst_23 = arith.constant 1.000000e+00 : f32
    %65 = vector.broadcast %cst_23 : f32 to vector<8x128xf32>
    %66 = arith.addf %65, %64 : vector<8x128xf32>
    %67 = arith.divf %65, %66 : vector<8x128xf32>
    %68 = arith.mulf %59, %39 : vector<8x128xf32>
    %69 = arith.mulf %53, %61 : vector<8x128xf32>
    %70 = arith.addf %68, %69 : vector<8x128xf32>
    %71 = math.tanh %70 : vector<8x128xf32>
    %72 = arith.mulf %67, %71 : vector<8x128xf32>
    %c2_i32 = arith.constant 2 : i32
    %73 = arith.index_cast %c2_i32 : i32 to index
    %c0_24 = arith.constant 0 : index
    %c0_25 = arith.constant 0 : index
    %74 = vector.load %arg7[%73, %c0_24, %c0_25] : memref<8x8x512xf32, #tpu.memory_space<vmem>>, vector<1x8x512xf32>
    %75 = vector.shape_cast %74 : vector<1x8x512xf32> to vector<8x512xf32>
    %76 = arith.truncf %72 : vector<8x128xf32> to vector<8x128xbf16>
    %cst_26 = arith.constant dense<0.000000e+00> : vector<8x512xf32>
    %77 = tpu.matmul %76, %8, %cst_26 {dimension_numbers = #tpu.dot_dimension_numbers<[1], [0], [0], [1], [0, 0, 1, 1], [], []>} : vector<8x128xbf16>, vector<128x512xbf16>, vector<8x512xf32> -> vector<8x512xf32>
    %78 = arith.addf %75, %77 : vector<8x512xf32>
    %79 = vector.extract_strided_slice %78 {offsets = [0, 0], sizes = [8, 128], strides = [1, 1]} : vector<8x512xf32> to vector<8x128xf32>
    %80 = arith.negf %79 : vector<8x128xf32>
    %81 = math.exp %80 : vector<8x128xf32>
    %cst_27 = arith.constant 1.000000e+00 : f32
    %82 = vector.broadcast %cst_27 : f32 to vector<8x128xf32>
    %83 = arith.addf %82, %81 : vector<8x128xf32>
    %84 = arith.divf %82, %83 : vector<8x128xf32>
    %85 = vector.extract_strided_slice %78 {offsets = [0, 128], sizes = [8, 128], strides = [1, 1]} : vector<8x512xf32> to vector<8x128xf32>
    %86 = arith.negf %85 : vector<8x128xf32>
    %87 = math.exp %86 : vector<8x128xf32>
    %cst_28 = arith.constant 1.000000e+00 : f32
    %88 = vector.broadcast %cst_28 : f32 to vector<8x128xf32>
    %89 = arith.addf %88, %87 : vector<8x128xf32>
    %90 = arith.divf %88, %89 : vector<8x128xf32>
    %91 = vector.extract_strided_slice %78 {offsets = [0, 256], sizes = [8, 128], strides = [1, 1]} : vector<8x512xf32> to vector<8x128xf32>
    %92 = math.tanh %91 : vector<8x128xf32>
    %93 = vector.extract_strided_slice %78 {offsets = [0, 384], sizes = [8, 128], strides = [1, 1]} : vector<8x512xf32> to vector<8x128xf32>
    %94 = arith.negf %93 : vector<8x128xf32>
    %95 = math.exp %94 : vector<8x128xf32>
    %cst_29 = arith.constant 1.000000e+00 : f32
    %96 = vector.broadcast %cst_29 : f32 to vector<8x128xf32>
    %97 = arith.addf %96, %95 : vector<8x128xf32>
    %98 = arith.divf %96, %97 : vector<8x128xf32>
    %99 = arith.mulf %90, %70 : vector<8x128xf32>
    %100 = arith.mulf %84, %92 : vector<8x128xf32>
    %101 = arith.addf %99, %100 : vector<8x128xf32>
    %102 = math.tanh %101 : vector<8x128xf32>
    %103 = arith.mulf %98, %102 : vector<8x128xf32>
    %c3_i32 = arith.constant 3 : i32
    %104 = arith.index_cast %c3_i32 : i32 to index
    %c0_30 = arith.constant 0 : index
    %c0_31 = arith.constant 0 : index
    %105 = vector.load %arg7[%104, %c0_30, %c0_31] : memref<8x8x512xf32, #tpu.memory_space<vmem>>, vector<1x8x512xf32>
    %106 = vector.shape_cast %105 : vector<1x8x512xf32> to vector<8x512xf32>
    %107 = arith.truncf %103 : vector<8x128xf32> to vector<8x128xbf16>
    %cst_32 = arith.constant dense<0.000000e+00> : vector<8x512xf32>
    %108 = tpu.matmul %107, %8, %cst_32 {dimension_numbers = #tpu.dot_dimension_numbers<[1], [0], [0], [1], [0, 0, 1, 1], [], []>} : vector<8x128xbf16>, vector<128x512xbf16>, vector<8x512xf32> -> vector<8x512xf32>
    %109 = arith.addf %106, %108 : vector<8x512xf32>
    %110 = vector.extract_strided_slice %109 {offsets = [0, 0], sizes = [8, 128], strides = [1, 1]} : vector<8x512xf32> to vector<8x128xf32>
    %111 = arith.negf %110 : vector<8x128xf32>
    %112 = math.exp %111 : vector<8x128xf32>
    %cst_33 = arith.constant 1.000000e+00 : f32
    %113 = vector.broadcast %cst_33 : f32 to vector<8x128xf32>
    %114 = arith.addf %113, %112 : vector<8x128xf32>
    %115 = arith.divf %113, %114 : vector<8x128xf32>
    %116 = vector.extract_strided_slice %109 {offsets = [0, 128], sizes = [8, 128], strides = [1, 1]} : vector<8x512xf32> to vector<8x128xf32>
    %117 = arith.negf %116 : vector<8x128xf32>
    %118 = math.exp %117 : vector<8x128xf32>
    %cst_34 = arith.constant 1.000000e+00 : f32
    %119 = vector.broadcast %cst_34 : f32 to vector<8x128xf32>
    %120 = arith.addf %119, %118 : vector<8x128xf32>
    %121 = arith.divf %119, %120 : vector<8x128xf32>
    %122 = vector.extract_strided_slice %109 {offsets = [0, 256], sizes = [8, 128], strides = [1, 1]} : vector<8x512xf32> to vector<8x128xf32>
    %123 = math.tanh %122 : vector<8x128xf32>
    %124 = vector.extract_strided_slice %109 {offsets = [0, 384], sizes = [8, 128], strides = [1, 1]} : vector<8x512xf32> to vector<8x128xf32>
    %125 = arith.negf %124 : vector<8x128xf32>
    %126 = math.exp %125 : vector<8x128xf32>
    %cst_35 = arith.constant 1.000000e+00 : f32
    %127 = vector.broadcast %cst_35 : f32 to vector<8x128xf32>
    %128 = arith.addf %127, %126 : vector<8x128xf32>
    %129 = arith.divf %127, %128 : vector<8x128xf32>
    %130 = arith.mulf %121, %101 : vector<8x128xf32>
    %131 = arith.mulf %115, %123 : vector<8x128xf32>
    %132 = arith.addf %130, %131 : vector<8x128xf32>
    %133 = math.tanh %132 : vector<8x128xf32>
    %134 = arith.mulf %129, %133 : vector<8x128xf32>
    %c4_i32 = arith.constant 4 : i32
    %135 = arith.index_cast %c4_i32 : i32 to index
    %c0_36 = arith.constant 0 : index
    %c0_37 = arith.constant 0 : index
    %136 = vector.load %arg7[%135, %c0_36, %c0_37] : memref<8x8x512xf32, #tpu.memory_space<vmem>>, vector<1x8x512xf32>
    %137 = vector.shape_cast %136 : vector<1x8x512xf32> to vector<8x512xf32>
    %138 = arith.truncf %134 : vector<8x128xf32> to vector<8x128xbf16>
    %cst_38 = arith.constant dense<0.000000e+00> : vector<8x512xf32>
    %139 = tpu.matmul %138, %8, %cst_38 {dimension_numbers = #tpu.dot_dimension_numbers<[1], [0], [0], [1], [0, 0, 1, 1], [], []>} : vector<8x128xbf16>, vector<128x512xbf16>, vector<8x512xf32> -> vector<8x512xf32>
    %140 = arith.addf %137, %139 : vector<8x512xf32>
    %141 = vector.extract_strided_slice %140 {offsets = [0, 0], sizes = [8, 128], strides = [1, 1]} : vector<8x512xf32> to vector<8x128xf32>
    %142 = arith.negf %141 : vector<8x128xf32>
    %143 = math.exp %142 : vector<8x128xf32>
    %cst_39 = arith.constant 1.000000e+00 : f32
    %144 = vector.broadcast %cst_39 : f32 to vector<8x128xf32>
    %145 = arith.addf %144, %143 : vector<8x128xf32>
    %146 = arith.divf %144, %145 : vector<8x128xf32>
    %147 = vector.extract_strided_slice %140 {offsets = [0, 128], sizes = [8, 128], strides = [1, 1]} : vector<8x512xf32> to vector<8x128xf32>
    %148 = arith.negf %147 : vector<8x128xf32>
    %149 = math.exp %148 : vector<8x128xf32>
    %cst_40 = arith.constant 1.000000e+00 : f32
    %150 = vector.broadcast %cst_40 : f32 to vector<8x128xf32>
    %151 = arith.addf %150, %149 : vector<8x128xf32>
    %152 = arith.divf %150, %151 : vector<8x128xf32>
    %153 = vector.extract_strided_slice %140 {offsets = [0, 256], sizes = [8, 128], strides = [1, 1]} : vector<8x512xf32> to vector<8x128xf32>
    %154 = math.tanh %153 : vector<8x128xf32>
    %155 = vector.extract_strided_slice %140 {offsets = [0, 384], sizes = [8, 128], strides = [1, 1]} : vector<8x512xf32> to vector<8x128xf32>
    %156 = arith.negf %155 : vector<8x128xf32>
    %157 = math.exp %156 : vector<8x128xf32>
    %cst_41 = arith.constant 1.000000e+00 : f32
    %158 = vector.broadcast %cst_41 : f32 to vector<8x128xf32>
    %159 = arith.addf %158, %157 : vector<8x128xf32>
    %160 = arith.divf %158, %159 : vector<8x128xf32>
    %161 = arith.mulf %152, %132 : vector<8x128xf32>
    %162 = arith.mulf %146, %154 : vector<8x128xf32>
    %163 = arith.addf %161, %162 : vector<8x128xf32>
    %164 = math.tanh %163 : vector<8x128xf32>
    %165 = arith.mulf %160, %164 : vector<8x128xf32>
    %c5_i32 = arith.constant 5 : i32
    %166 = arith.index_cast %c5_i32 : i32 to index
    %c0_42 = arith.constant 0 : index
    %c0_43 = arith.constant 0 : index
    %167 = vector.load %arg7[%166, %c0_42, %c0_43] : memref<8x8x512xf32, #tpu.memory_space<vmem>>, vector<1x8x512xf32>
    %168 = vector.shape_cast %167 : vector<1x8x512xf32> to vector<8x512xf32>
    %169 = arith.truncf %165 : vector<8x128xf32> to vector<8x128xbf16>
    %cst_44 = arith.constant dense<0.000000e+00> : vector<8x512xf32>
    %170 = tpu.matmul %169, %8, %cst_44 {dimension_numbers = #tpu.dot_dimension_numbers<[1], [0], [0], [1], [0, 0, 1, 1], [], []>} : vector<8x128xbf16>, vector<128x512xbf16>, vector<8x512xf32> -> vector<8x512xf32>
    %171 = arith.addf %168, %170 : vector<8x512xf32>
    %172 = vector.extract_strided_slice %171 {offsets = [0, 0], sizes = [8, 128], strides = [1, 1]} : vector<8x512xf32> to vector<8x128xf32>
    %173 = arith.negf %172 : vector<8x128xf32>
    %174 = math.exp %173 : vector<8x128xf32>
    %cst_45 = arith.constant 1.000000e+00 : f32
    %175 = vector.broadcast %cst_45 : f32 to vector<8x128xf32>
    %176 = arith.addf %175, %174 : vector<8x128xf32>
    %177 = arith.divf %175, %176 : vector<8x128xf32>
    %178 = vector.extract_strided_slice %171 {offsets = [0, 128], sizes = [8, 128], strides = [1, 1]} : vector<8x512xf32> to vector<8x128xf32>
    %179 = arith.negf %178 : vector<8x128xf32>
    %180 = math.exp %179 : vector<8x128xf32>
    %cst_46 = arith.constant 1.000000e+00 : f32
    %181 = vector.broadcast %cst_46 : f32 to vector<8x128xf32>
    %182 = arith.addf %181, %180 : vector<8x128xf32>
    %183 = arith.divf %181, %182 : vector<8x128xf32>
    %184 = vector.extract_strided_slice %171 {offsets = [0, 256], sizes = [8, 128], strides = [1, 1]} : vector<8x512xf32> to vector<8x128xf32>
    %185 = math.tanh %184 : vector<8x128xf32>
    %186 = vector.extract_strided_slice %171 {offsets = [0, 384], sizes = [8, 128], strides = [1, 1]} : vector<8x512xf32> to vector<8x128xf32>
    %187 = arith.negf %186 : vector<8x128xf32>
    %188 = math.exp %187 : vector<8x128xf32>
    %cst_47 = arith.constant 1.000000e+00 : f32
    %189 = vector.broadcast %cst_47 : f32 to vector<8x128xf32>
    %190 = arith.addf %189, %188 : vector<8x128xf32>
    %191 = arith.divf %189, %190 : vector<8x128xf32>
    %192 = arith.mulf %183, %163 : vector<8x128xf32>
    %193 = arith.mulf %177, %185 : vector<8x128xf32>
    %194 = arith.addf %192, %193 : vector<8x128xf32>
    %195 = math.tanh %194 : vector<8x128xf32>
    %196 = arith.mulf %191, %195 : vector<8x128xf32>
    %c6_i32 = arith.constant 6 : i32
    %197 = arith.index_cast %c6_i32 : i32 to index
    %c0_48 = arith.constant 0 : index
    %c0_49 = arith.constant 0 : index
    %198 = vector.load %arg7[%197, %c0_48, %c0_49] : memref<8x8x512xf32, #tpu.memory_space<vmem>>, vector<1x8x512xf32>
    %199 = vector.shape_cast %198 : vector<1x8x512xf32> to vector<8x512xf32>
    %200 = arith.truncf %196 : vector<8x128xf32> to vector<8x128xbf16>
    %cst_50 = arith.constant dense<0.000000e+00> : vector<8x512xf32>
    %201 = tpu.matmul %200, %8, %cst_50 {dimension_numbers = #tpu.dot_dimension_numbers<[1], [0], [0], [1], [0, 0, 1, 1], [], []>} : vector<8x128xbf16>, vector<128x512xbf16>, vector<8x512xf32> -> vector<8x512xf32>
    %202 = arith.addf %199, %201 : vector<8x512xf32>
    %203 = vector.extract_strided_slice %202 {offsets = [0, 0], sizes = [8, 128], strides = [1, 1]} : vector<8x512xf32> to vector<8x128xf32>
    %204 = arith.negf %203 : vector<8x128xf32>
    %205 = math.exp %204 : vector<8x128xf32>
    %cst_51 = arith.constant 1.000000e+00 : f32
    %206 = vector.broadcast %cst_51 : f32 to vector<8x128xf32>
    %207 = arith.addf %206, %205 : vector<8x128xf32>
    %208 = arith.divf %206, %207 : vector<8x128xf32>
    %209 = vector.extract_strided_slice %202 {offsets = [0, 128], sizes = [8, 128], strides = [1, 1]} : vector<8x512xf32> to vector<8x128xf32>
    %210 = arith.negf %209 : vector<8x128xf32>
    %211 = math.exp %210 : vector<8x128xf32>
    %cst_52 = arith.constant 1.000000e+00 : f32
    %212 = vector.broadcast %cst_52 : f32 to vector<8x128xf32>
    %213 = arith.addf %212, %211 : vector<8x128xf32>
    %214 = arith.divf %212, %213 : vector<8x128xf32>
    %215 = vector.extract_strided_slice %202 {offsets = [0, 256], sizes = [8, 128], strides = [1, 1]} : vector<8x512xf32> to vector<8x128xf32>
    %216 = math.tanh %215 : vector<8x128xf32>
    %217 = vector.extract_strided_slice %202 {offsets = [0, 384], sizes = [8, 128], strides = [1, 1]} : vector<8x512xf32> to vector<8x128xf32>
    %218 = arith.negf %217 : vector<8x128xf32>
    %219 = math.exp %218 : vector<8x128xf32>
    %cst_53 = arith.constant 1.000000e+00 : f32
    %220 = vector.broadcast %cst_53 : f32 to vector<8x128xf32>
    %221 = arith.addf %220, %219 : vector<8x128xf32>
    %222 = arith.divf %220, %221 : vector<8x128xf32>
    %223 = arith.mulf %214, %194 : vector<8x128xf32>
    %224 = arith.mulf %208, %216 : vector<8x128xf32>
    %225 = arith.addf %223, %224 : vector<8x128xf32>
    %226 = math.tanh %225 : vector<8x128xf32>
    %227 = arith.mulf %222, %226 : vector<8x128xf32>
    %c7_i32 = arith.constant 7 : i32
    %228 = arith.index_cast %c7_i32 : i32 to index
    %c0_54 = arith.constant 0 : index
    %c0_55 = arith.constant 0 : index
    %229 = vector.load %arg7[%228, %c0_54, %c0_55] : memref<8x8x512xf32, #tpu.memory_space<vmem>>, vector<1x8x512xf32>
    %230 = vector.shape_cast %229 : vector<1x8x512xf32> to vector<8x512xf32>
    %231 = arith.truncf %227 : vector<8x128xf32> to vector<8x128xbf16>
    %cst_56 = arith.constant dense<0.000000e+00> : vector<8x512xf32>
    %232 = tpu.matmul %231, %8, %cst_56 {dimension_numbers = #tpu.dot_dimension_numbers<[1], [0], [0], [1], [0, 0, 1, 1], [], []>} : vector<8x128xbf16>, vector<128x512xbf16>, vector<8x512xf32> -> vector<8x512xf32>
    %233 = arith.addf %230, %232 : vector<8x512xf32>
    %234 = vector.extract_strided_slice %233 {offsets = [0, 0], sizes = [8, 128], strides = [1, 1]} : vector<8x512xf32> to vector<8x128xf32>
    %235 = arith.negf %234 : vector<8x128xf32>
    %236 = math.exp %235 : vector<8x128xf32>
    %cst_57 = arith.constant 1.000000e+00 : f32
    %237 = vector.broadcast %cst_57 : f32 to vector<8x128xf32>
    %238 = arith.addf %237, %236 : vector<8x128xf32>
    %239 = arith.divf %237, %238 : vector<8x128xf32>
    %240 = vector.extract_strided_slice %233 {offsets = [0, 128], sizes = [8, 128], strides = [1, 1]} : vector<8x512xf32> to vector<8x128xf32>
    %241 = arith.negf %240 : vector<8x128xf32>
    %242 = math.exp %241 : vector<8x128xf32>
    %cst_58 = arith.constant 1.000000e+00 : f32
    %243 = vector.broadcast %cst_58 : f32 to vector<8x128xf32>
    %244 = arith.addf %243, %242 : vector<8x128xf32>
    %245 = arith.divf %243, %244 : vector<8x128xf32>
    %246 = vector.extract_strided_slice %233 {offsets = [0, 256], sizes = [8, 128], strides = [1, 1]} : vector<8x512xf32> to vector<8x128xf32>
    %247 = math.tanh %246 : vector<8x128xf32>
    %248 = vector.extract_strided_slice %233 {offsets = [0, 384], sizes = [8, 128], strides = [1, 1]} : vector<8x512xf32> to vector<8x128xf32>
    %249 = arith.negf %248 : vector<8x128xf32>
    %250 = math.exp %249 : vector<8x128xf32>
    %cst_59 = arith.constant 1.000000e+00 : f32
    %251 = vector.broadcast %cst_59 : f32 to vector<8x128xf32>
    %252 = arith.addf %251, %250 : vector<8x128xf32>
    %253 = arith.divf %251, %252 : vector<8x128xf32>
    %254 = arith.mulf %245, %225 : vector<8x128xf32>
    %255 = arith.mulf %239, %247 : vector<8x128xf32>
    %256 = arith.addf %254, %255 : vector<8x128xf32>
    %257 = math.tanh %256 : vector<8x128xf32>
    %258 = arith.mulf %253, %257 : vector<8x128xf32>
    %c8_i32 = arith.constant 8 : i32
    %259 = arith.truncf %258 : vector<8x128xf32> to vector<8x128xbf16>
    %c0_60 = arith.constant 0 : index
    %c0_61 = arith.constant 0 : index
    %260 = vector.load %arg4[%c0_60, %c0_61] : memref<128x128xbf16, #tpu.memory_space<vmem>>, vector<128x128xbf16>
    %cst_62 = arith.constant dense<0.000000e+00> : vector<8x128xf32>
    %261 = tpu.matmul %259, %260, %cst_62 {dimension_numbers = #tpu.dot_dimension_numbers<[1], [0], [0], [1], [0, 0, 1, 1], [], []>} : vector<8x128xbf16>, vector<128x128xbf16>, vector<8x128xf32> -> vector<8x128xf32>
    %c0_63 = arith.constant 0 : index
    %c0_64 = arith.constant 0 : index
    %262 = vector.load %arg5[%c0_63, %c0_64] : memref<1x128xf32, #tpu.memory_space<vmem>>, vector<1x128xf32>
    %263 = vector.broadcast %262 : vector<1x128xf32> to vector<8x128xf32>
    %264 = arith.addf %261, %263 : vector<8x128xf32>
    %c0_65 = arith.constant 0 : index
    %c0_66 = arith.constant 0 : index
    %265 = vector.load %arg6[%c0_65, %c0_66] : memref<8x128xf32, #tpu.memory_space<vmem>>, vector<8x128xf32>
    tpu.vector_store %arg6[%c0_65, %c0_66], %264 {strides = array<i32>} : memref<8x128xf32, #tpu.memory_space<vmem>>, vector<8x128xf32>,
    return
  }
}

</mosaic_0001>

<llo_original>
// kernel: tpu_custom_call.1
$region0: #{tpu_custom_call.1}
  #allocation0 [shape = 'u32[]', space=smem, size = 0x4, offset = 0x4, fixed_abs, tag = 'smem constant byte address 0x4 - core index']
  #allocation1 [shape = 'u32[144,128]{1,0:T(1,128)}', space=vmem, size = 0x12000, scoped, tag = 'internal scratch']
  #allocation2 [shape = 'f32[8,8,512]{2,1,0:T(8,128)}', space=vmem, size = 0x20000, scoped, tag = 'scratch operand']
  %s0 = inlined_call_operand.hbm [shape: bf16[64,128], index: 0, kind: input, shape index: {}]
  %s1 = inlined_call_operand.hbm [shape: bf16[128,512], index: 1, kind: input, shape index: {}]
  %s2 = inlined_call_operand.hbm [shape: bf16[128,512], index: 2, kind: input, shape index: {}]
  %s3 = inlined_call_operand.vmem [shape: f32[1,512], index: 3, kind: input, shape index: {}]
  %s4 = inlined_call_operand.hbm [shape: bf16[128,128], index: 4, kind: input, shape index: {}]
  %s5 = inlined_call_operand.vmem [shape: f32[1,128], index: 5, kind: input, shape index: {}]
  %s6 = inlined_call_operand.hbm [shape: f32[8,128], index: 6, kind: output, shape index: {}]
  %s7 = sld [smem:[#allocation0]]
  $region50: #{tpu_custom_call.1} parent=0
    _
  %s9 = ssub.s32 1, %s7
  %s10 = scalar_select 0, %s9, %s7
  $region1: #{tpu_custom_call.1} parent=0
    #allocation3 [shape = 'u8[16384]{0}', space=vmem, size = 0x4000, scoped, tag = 'input window, operand 0, single buffered']
    #allocation4 [shape = 's32[1]{0}', space=sflag, size = 0x4, scoped, tag = 'scoped memory for tpu_custom_call.1']
    #allocation5 [shape = 's32[1]{0}', space=sflag, size = 0x4, scoped, tag = 'scoped memory for tpu_custom_call.1']
    #allocation6 [shape = 'u8[131072]{0}', space=vmem, size = 0x20000, scoped, tag = 'input window, operand 1, single buffered']
    #allocation7 [shape = 's32[1]{0}', space=sflag, size = 0x4, scoped, tag = 'scoped memory for tpu_custom_call.1']
    #allocation8 [shape = 'u8[131072]{0}', space=vmem, size = 0x20000, scoped, tag = 'input window, operand 2, single buffered']
    #allocation9 [shape = 'u8[32768]{0}', space=vmem, size = 0x8000, scoped, tag = 'input window, operand 4, single buffered']
    #allocation10 [shape = 's32[1]{0}', space=sflag, size = 0x4, scoped, tag = 'scoped memory for tpu_custom_call.1']
    #allocation11 [shape = 'u8[4096]{0}', space=vmem, size = 0x1000, scoped, tag = 'output window, operand 0, single buffered']
    %11 = vsyncpa [#allocation4], 0
    %12 = vsyncpa [#allocation7], 0
    %13 = vsyncpa [#allocation10], 0
    %14 = vsyncpa [#allocation5], 0
    // Predicated region
    $region2: #{tpu_custom_call.1} parent=1 // pred_check
      _
    $region3: #{tpu_custom_call.1} parent=1 // pred_check_branch
      %16 = sbr.rel (0) target = $region5
    $region4: #{tpu_custom_call.1} parent=1 // pred_region
      %s18 = ssub.s32 512, 512
      %19 = vsyncadd [#allocation4], %s18
      %s20 = sshll.u32 [#allocation3], 4
      %s21 = int_to_ptr.vmem [resolvable:$true] %s20
      %26 = dma.hbm_to_vmem [thread:$0]  %s0, 512, %s21, [#allocation4], 64, 64, 4
    $region5: #{tpu_custom_call.1} parent=1 // pred_fallthru
      _
    // Predicated region
    $region6: #{tpu_custom_call.1} parent=1 // pred_check
      _
    $region7: #{tpu_custom_call.1} parent=1 // pred_check_branch
      %28 = sbr.rel (0) target = $region9
    $region8: #{tpu_custom_call.1} parent=1 // pred_region
      %s30 = ssub.s32 4096, 4096
      %31 = vsyncadd [#allocation7], %s30
      %s32 = sshll.u32 [#allocation6], 4
      %s33 = int_to_ptr.vmem [resolvable:$true] %s32
      %38 = dma.hbm_to_vmem [thread:$0]  %s1, 4096, %s33, [#allocation7], 256, 256, 16
    $region9: #{tpu_custom_call.1} parent=1 // pred_fallthru
      _
    // Predicated region
    $region10: #{tpu_custom_call.1} parent=1 // pred_check
      _
    $region11: #{tpu_custom_call.1} parent=1 // pred_check_branch
      %40 = sbr.rel (0) target = $region13
    $region12: #{tpu_custom_call.1} parent=1 // pred_region
      %s42 = ssub.s32 4096, 4096
      %43 = vsyncadd [#allocation7], %s42
      %s44 = sshll.u32 [#allocation8], 4
      %s45 = int_to_ptr.vmem [resolvable:$true] %s44
      %50 = dma.hbm_to_vmem [thread:$0]  %s2, 4096, %s45, [#allocation7], 256, 256, 16
    $region13: #{tpu_custom_call.1} parent=1 // pred_fallthru
      _
    // Predicated region
    $region14: #{tpu_custom_call.1} parent=1 // pred_check
      _
    $region15: #{tpu_custom_call.1} parent=1 // pred_check_branch
      %52 = sbr.rel (0) target = $region17
    $region16: #{tpu_custom_call.1} parent=1 // pred_region
      _
    $region17: #{tpu_custom_call.1} parent=1 // pred_fallthru
      _
    // Predicated region
    $region18: #{tpu_custom_call.1} parent=1 // pred_check
      _
    $region19: #{tpu_custom_call.1} parent=1 // pred_check_branch
      %54 = sbr.rel (0) target = $region21
    $region20: #{tpu_custom_call.1} parent=1 // pred_region
      %s56 = ssub.s32 1024, 1024
      %57 = vsyncadd [#allocation10], %s56
      %s58 = sshll.u32 [#allocation9], 4
      %s59 = int_to_ptr.vmem [resolvable:$true] %s58
      %64 = dma.hbm_to_vmem [thread:$0]  %s4, 1024, %s59, [#allocation10], 64, 64, 4
    $region21: #{tpu_custom_call.1} parent=1 // pred_fallthru
      _
    // Predicated region
    $region22: #{tpu_custom_call.1} parent=1 // pred_check
      _
    $region23: #{tpu_custom_call.1} parent=1 // pred_check_branch
      %66 = sbr.rel (0) target = $region25
    $region24: #{tpu_custom_call.1} parent=1 // pred_region
      _
    $region25: #{tpu_custom_call.1} parent=1 // pred_fallthru
      _
    // Predicated region
    $region26: #{tpu_custom_call.1} parent=1 // pred_check
      _
    $region27: #{tpu_custom_call.1} parent=1 // pred_check_branch
      %68 = sbr.rel (0) target = $region29
    $region28: #{tpu_custom_call.1} parent=1 // pred_region
      %69 = dma.done [#allocation4], 512
    $region29: #{tpu_custom_call.1} parent=1 // pred_fallthru
      _
    // Predicated region
    $region30: #{tpu_custom_call.1} parent=1 // pred_check
      _
    $region31: #{tpu_custom_call.1} parent=1 // pred_check_branch
      %71 = sbr.rel (0) target = $region33
    $region32: #{tpu_custom_call.1} parent=1 // pred_region
      %72 = dma.done [#allocation7], 4096
    $region33: #{tpu_custom_call.1} parent=1 // pred_fallthru
      _
    // Predicated region
    $region34: #{tpu_custom_call.1} parent=1 // pred_check
      _
    $region35: #{tpu_custom_call.1} parent=1 // pred_check_branch
      %74 = sbr.rel (0) target = $region37
    $region36: #{tpu_custom_call.1} parent=1 // pred_region
      %75 = dma.done [#allocation7], 4096
    $region37: #{tpu_custom_call.1} parent=1 // pred_fallthru
      _
    // Predicated region
    $region38: #{tpu_custom_call.1} parent=1 // pred_check
      _
    $region39: #{tpu_custom_call.1} parent=1 // pred_check_branch
      %77 = sbr.rel (0) target = $region41
    $region40: #{tpu_custom_call.1} parent=1 // pred_region
      %78 = dma.done [#allocation10], 1024
    $region41: #{tpu_custom_call.1} parent=1 // pred_fallthru
      _
    %v80 = vld [vmem:[#allocation3] sm:$0xf]
    %v81 = vld [vmem:[#allocation3 + $0x4] sm:$0xf]
    %v82 = vld [vmem:[#allocation3 + $0x8] sm:$0xf]
    %v83 = vld [vmem:[#allocation3 + $0xc] sm:$0xf]
    %v84 = vld [vmem:[#allocation3 + $0x10] sm:$0xf]
    %v85 = vld [vmem:[#allocation3 + $0x14] sm:$0xf]
    %v86 = vld [vmem:[#allocation3 + $0x18] sm:$0xf]
    %v87 = vld [vmem:[#allocation3 + $0x1c] sm:$0xf]
    %v88 = vld [vmem:[#allocation6] sm:$0xff]
    %v89 = vld [vmem:[#allocation6 + $0x8] sm:$0xff]
    %v90 = vld [vmem:[#allocation6 + $0x10] sm:$0xff]
    %v91 = vld [vmem:[#allocation6 + $0x18] sm:$0xff]
    %v92 = vld [vmem:[#allocation6 + $0x20] sm:$0xff]
    %v93 = vld [vmem:[#allocation6 + $0x28] sm:$0xff]
    %v94 = vld [vmem:[#allocation6 + $0x30] sm:$0xff]
    %v95 = vld [vmem:[#allocation6 + $0x38] sm:$0xff]
    %v96 = vld [vmem:[#allocation6 + $0x40] sm:$0xff]
    %v97 = vld [vmem:[#allocation6 + $0x48] sm:$0xff]
    %v98 = vld [vmem:[#allocation6 + $0x50] sm:$0xff]
    %v99 = vld [vmem:[#allocation6 + $0x58] sm:$0xff]
    %v100 = vld [vmem:[#allocation6 + $0x60] sm:$0xff]
    %v101 = vld [vmem:[#allocation6 + $0x68] sm:$0xff]
    %v102 = vld [vmem:[#allocation6 + $0x70] sm:$0xff]
    %v103 = vld [vmem:[#allocation6 + $0x78] sm:$0xff]
    %v104 = vld [vmem:[#allocation6 + $0x80] sm:$0xff]
    %v105 = vld [vmem:[#allocation6 + $0x88] sm:$0xff]
    %v106 = vld [vmem:[#allocation6 + $0x90] sm:$0xff]
    %v107 = vld [vmem:[#allocation6 + $0x98] sm:$0xff]
    %v108 = vld [vmem:[#allocation6 + $0xa0] sm:$0xff]
    %v109 = vld [vmem:[#allocation6 + $0xa8] sm:$0xff]
    %v110 = vld [vmem:[#allocation6 + $0xb0] sm:$0xff]
    %v111 = vld [vmem:[#allocation6 + $0xb8] sm:$0xff]
    %v112 = vld [vmem:[#allocation6 + $0xc0] sm:$0xff]
    %v113 = vld [vmem:[#allocation6 + $0xc8] sm:$0xff]
    %v114 = vld [vmem:[#allocation6 + $0xd0] sm:$0xff]
    %v115 = vld [vmem:[#allocation6 + $0xd8] sm:$0xff]
    %v116 = vld [vmem:[#allocation6 + $0xe0] sm:$0xff]
    %v117 = vld [vmem:[#allocation6 + $0xe8] sm:$0xff]
    %v118 = vld [vmem:[#allocation6 + $0xf0] sm:$0xff]
    %v119 = vld [vmem:[#allocation6 + $0xf8] sm:$0xff]
    %v120 = vld [vmem:[%s3] sm:$0xf]
    %v122 = vlaneseq
    %v123 = vshrl.u32 %v122, 7
    %v124 = vsub.s32 0, %v123
    %v125 = vrot.slane %v120, %v124
    %v126 = vlaneseq
    %v127 = vshrl.u32 %v126, 7
    %v128 = vsub.s32 1, %v127
    %v129 = vrot.slane %v120, %v128
    %v130 = vlaneseq
    %v131 = vshrl.u32 %v130, 7
    %v132 = vsub.s32 2, %v131
    %v133 = vrot.slane %v120, %v132
    %v134 = vlaneseq
    %v135 = vshrl.u32 %v134, 7
    %v136 = vsub.s32 3, %v135
    %v137 = vrot.slane %v120, %v136
    %v150 = vunpack.c.l.b16 %v80
    %v151 = vunpack.c.l.b16 %v81
    %v152 = vunpack.c.l.b16 %v82
    %v153 = vunpack.c.l.b16 %v83
    %v154 = vunpack.c.l.b16 %v84
    %v155 = vunpack.c.l.b16 %v85
    %v156 = vunpack.c.l.b16 %v86
    %v157 = vunpack.c.l.b16 %v87
    %v158 = vpack.c.b16 %v151, %v150
    %v159 = vpack.c.b16 %v153, %v152
    %v160 = vpack.c.b16 %v155, %v154
    %v161 = vpack.c.b16 %v157, %v156
    %v198 = vunpack.c.l.b16 %v88
    %v199 = vunpack.c.h.b16 %v88
    %v200 = vunpack.c.l.b16 %v89
    %v201 = vunpack.c.h.b16 %v89
    %v202 = vunpack.c.l.b16 %v90
    %v203 = vunpack.c.h.b16 %v90
    %v204 = vunpack.c.l.b16 %v91
    %v205 = vunpack.c.h.b16 %v91
    %v206 = vunpack.c.l.b16 %v92
    %v207 = vunpack.c.h.b16 %v92
    %v208 = vunpack.c.l.b16 %v93
    %v209 = vunpack.c.h.b16 %v93
    %v210 = vunpack.c.l.b16 %v94
    %v211 = vunpack.c.h.b16 %v94
    %v212 = vunpack.c.l.b16 %v95
    %v213 = vunpack.c.h.b16 %v95
    %v214 = vunpack.c.l.b16 %v96
    %v215 = vunpack.c.h.b16 %v96
    %v216 = vunpack.c.l.b16 %v97
    %v217 = vunpack.c.h.b16 %v97
    %v218 = vunpack.c.l.b16 %v98
    %v219 = vunpack.c.h.b16 %v98
    %v220 = vunpack.c.l.b16 %v99
    %v221 = vunpack.c.h.b16 %v99
    %v222 = vunpack.c.l.b16 %v100
    %v223 = vunpack.c.h.b16 %v100
    %v224 = vunpack.c.l.b16 %v101
    %v225 = vunpack.c.h.b16 %v101
    %v226 = vunpack.c.l.b16 %v102
    %v227 = vunpack.c.h.b16 %v102
    %v228 = vunpack.c.l.b16 %v103
    %v229 = vunpack.c.h.b16 %v103
    %v230 = vunpack.c.l.b16 %v104
    %v231 = vunpack.c.h.b16 %v104
    %v232 = vunpack.c.l.b16 %v105
    %v233 = vunpack.c.h.b16 %v105
    %v234 = vunpack.c.l.b16 %v106
    %v235 = vunpack.c.h.b16 %v106
    %v236 = vunpack.c.l.b16 %v107
    %v237 = vunpack.c.h.b16 %v107
    %v238 = vunpack.c.l.b16 %v108
    %v239 = vunpack.c.h.b16 %v108
    %v240 = vunpack.c.l.b16 %v109
    %v241 = vunpack.c.h.b16 %v109
    %v242 = vunpack.c.l.b16 %v110
    %v243 = vunpack.c.h.b16 %v110
    %v244 = vunpack.c.l.b16 %v111
    %v245 = vunpack.c.h.b16 %v111
    %v246 = vunpack.c.l.b16 %v112
    %v247 = vunpack.c.h.b16 %v112
    %v248 = vunpack.c.l.b16 %v113
    %v249 = vunpack.c.h.b16 %v113
    %v250 = vunpack.c.l.b16 %v114
    %v251 = vunpack.c.h.b16 %v114
    %v252 = vunpack.c.l.b16 %v115
    %v253 = vunpack.c.h.b16 %v115
    %v254 = vunpack.c.l.b16 %v116
    %v255 = vunpack.c.h.b16 %v116
    %v256 = vunpack.c.l.b16 %v117
    %v257 = vunpack.c.h.b16 %v117
    %v258 = vunpack.c.l.b16 %v118
    %v259 = vunpack.c.h.b16 %v118
    %v260 = vunpack.c.l.b16 %v119
    %v261 = vunpack.c.h.b16 %v119
    %v262 = vpack.c.b16 %v202, %v198
    %v263 = vpack.c.b16 %v203, %v199
    %v264 = vpack.c.b16 %v204, %v200
    %v265 = vpack.c.b16 %v205, %v201
    %v266 = vpack.c.b16 %v210, %v206
    %v267 = vpack.c.b16 %v211, %v207
    %v268 = vpack.c.b16 %v212, %v208
    %v269 = vpack.c.b16 %v213, %v209
    %v270 = vpack.c.b16 %v218, %v214
    %v271 = vpack.c.b16 %v219, %v215
    %v272 = vpack.c.b16 %v220, %v216
    %v273 = vpack.c.b16 %v221, %v217
    %v274 = vpack.c.b16 %v226, %v222
    %v275 = vpack.c.b16 %v227, %v223
    %v276 = vpack.c.b16 %v228, %v224
    %v277 = vpack.c.b16 %v229, %v225
    %v278 = vpack.c.b16 %v234, %v230
    %v279 = vpack.c.b16 %v235, %v231
    %v280 = vpack.c.b16 %v236, %v232
    %v281 = vpack.c.b16 %v237, %v233
    %v282 = vpack.c.b16 %v242, %v238
    %v283 = vpack.c.b16 %v243, %v239
    %v284 = vpack.c.b16 %v244, %v240
    %v285 = vpack.c.b16 %v245, %v241
    %v286 = vpack.c.b16 %v250, %v246
    %v287 = vpack.c.b16 %v251, %v247
    %v288 = vpack.c.b16 %v252, %v248
    %v289 = vpack.c.b16 %v253, %v249
    %v290 = vpack.c.b16 %v258, %v254
    %v291 = vpack.c.b16 %v259, %v255
    %v292 = vpack.c.b16 %v260, %v256
    %v293 = vpack.c.b16 %v261, %v257
    %326 = vmatprep.subr.bf16.mxu0 %v263
    %327 = vmatpush1.bf16.msra.mxu0 %v262
    %328 = vmatprep.subr.bf16.mxu0 %v267
    %329 = vmatpush1.bf16.msra.mxu0 %v266
    %330 = vmatprep.subr.bf16.mxu0 %v271
    %331 = vmatpush1.bf16.msra.mxu0 %v270
    %332 = vmatprep.subr.bf16.mxu0 %v275
    %333 = vmatpush1.bf16.msra.mxu0 %v274
    %334 = vmatprep.subr.bf16.mxu0 %v279
    %335 = vmatpush1.bf16.msra.mxu0 %v278
    %336 = vmatprep.subr.bf16.mxu0 %v283
    %337 = vmatpush1.bf16.msra.mxu0 %v282
    %338 = vmatprep.subr.bf16.mxu0 %v287
    %339 = vmatpush1.bf16.msra.mxu0 %v286
    %340 = vmatprep.subr.bf16.mxu0 %v291
    %341 = vmatpush1.bf16.msra.mxu0 %v290
    %342 = vmatprep.subr.bf16.mxu0 0
    %343 = vmatpush1.bf16.msra.mxu0 0
    %344 = vmatprep.subr.bf16.mxu0 0
    %345 = vmatpush1.bf16.msra.mxu0 0
    %346 = vmatprep.subr.bf16.mxu0 0
    %347 = vmatpush1.bf16.msra.mxu0 0
    %348 = vmatprep.subr.bf16.mxu0 0
    %349 = vmatpush1.bf16.msra.mxu0 0
    %350 = vmatprep.subr.bf16.mxu0 0
    %351 = vmatpush1.bf16.msra.mxu0 0
    %352 = vmatprep.subr.bf16.mxu0 0
    %353 = vmatpush1.bf16.msra.mxu0 0
    %354 = vmatprep.subr.bf16.mxu0 0
    %355 = vmatpush1.bf16.msra.mxu0 0
    %356 = vmatprep.subr.bf16.mxu0 0
    %357 = vmatpush1.bf16.msra.mxu0 0
    %358 = vmatprep.mubr.bf16.mxu0 0
    %359 = vmatmul.mubr.bf16.gmra.mrb[0].mxu0 %v158
    %v360 = vpop.f32.mrb[0].mxu0
    %v361 = vadd.f32 %v125, %v360
    %v362 = vpop.f32.mrb[0].mxu0
    %v363 = vadd.f32 %v129, %v362
    %v364 = vpop.f32.mrb[0].mxu0
    %v365 = vadd.f32 %v125, %v364
    %v366 = vpop.f32.mrb[0].mxu0
    %v367 = vadd.f32 %v129, %v366
    %368 = vmatprep.mubr.bf16.mxu0 0
    %369 = vmatmul.mubr.bf16.gmra.mrb[0].mxu0 %v159
    %v370 = vpop.f32.mrb[0].mxu0
    %v371 = vadd.f32 %v125, %v370
    %v372 = vpop.f32.mrb[0].mxu0
    %v373 = vadd.f32 %v129, %v372
    %v374 = vpop.f32.mrb[0].mxu0
    %v375 = vadd.f32 %v125, %v374
    %v376 = vpop.f32.mrb[0].mxu0
    %v377 = vadd.f32 %v129, %v376
    %378 = vmatprep.mubr.bf16.mxu0 0
    %379 = vmatmul.mubr.bf16.gmra.mrb[0].mxu0 %v160
    %v380 = vpop.f32.mrb[0].mxu0
    %v381 = vadd.f32 %v125, %v380
    %v382 = vpop.f32.mrb[0].mxu0
    %v383 = vadd.f32 %v129, %v382
    %v384 = vpop.f32.mrb[0].mxu0
    %v385 = vadd.f32 %v125, %v384
    %v386 = vpop.f32.mrb[0].mxu0
    %v387 = vadd.f32 %v129, %v386
    %388 = vmatprep.mubr.bf16.mxu0 0
    %389 = vmatmul.mubr.bf16.gmra.mrb[0].mxu0 %v161
    %v390 = vpop.f32.mrb[0].mxu0
    %v391 = vadd.f32 %v125, %v390
    %v392 = vpop.f32.mrb[0].mxu0
    %v393 = vadd.f32 %v129, %v392
    %v394 = vpop.f32.mrb[0].mxu0
    %v395 = vadd.f32 %v125, %v394
    %v396 = vpop.f32.mrb[0].mxu0
    %v397 = vadd.f32 %v129, %v396
    %398 = vdwg.mxu0
    %399 = vmatprep.subr.bf16.mxu0 %v265
    %400 = vmatpush1.bf16.msra.mxu0 %v264
    %401 = vmatprep.subr.bf16.mxu0 %v269
    %402 = vmatpush1.bf16.msra.mxu0 %v268
    %403 = vmatprep.subr.bf16.mxu0 %v273
    %404 = vmatpush1.bf16.msra.mxu0 %v272
    %405 = vmatprep.subr.bf16.mxu0 %v277
    %406 = vmatpush1.bf16.msra.mxu0 %v276
    %407 = vmatprep.subr.bf16.mxu0 %v281
    %408 = vmatpush1.bf16.msra.mxu0 %v280
    %409 = vmatprep.subr.bf16.mxu0 %v285
    %410 = vmatpush1.bf16.msra.mxu0 %v284
    %411 = vmatprep.subr.bf16.mxu0 %v289
    %412 = vmatpush1.bf16.msra.mxu0 %v288
    %413 = vmatprep.subr.bf16.mxu0 %v293
    %414 = vmatpush1.bf16.msra.mxu0 %v292
    %415 = vmatprep.subr.bf16.mxu0 0
    %416 = vmatpush1.bf16.msra.mxu0 0
    %417 = vmatprep.subr.bf16.mxu0 0
    %418 = vmatpush1.bf16.msra.mxu0 0
    %419 = vmatprep.subr.bf16.mxu0 0
    %420 = vmatpush1.bf16.msra.mxu0 0
    %421 = vmatprep.subr.bf16.mxu0 0
    %422 = vmatpush1.bf16.msra.mxu0 0
    %423 = vmatprep.subr.bf16.mxu0 0
    %424 = vmatpush1.bf16.msra.mxu0 0
    %425 = vmatprep.subr.bf16.mxu0 0
    %426 = vmatpush1.bf16.msra.mxu0 0
    %427 = vmatprep.subr.bf16.mxu0 0
    %428 = vmatpush1.bf16.msra.mxu0 0
    %429 = vmatprep.subr.bf16.mxu0 0
    %430 = vmatpush1.bf16.msra.mxu0 0
    %431 = vmatprep.mubr.bf16.mxu0 0
    %432 = vmatmul.mubr.bf16.gmra.mrb[0].mxu0 %v158
    %v433 = vpop.f32.mrb[0].mxu0
    %v434 = vadd.f32 %v133, %v433
    %v435 = vpop.f32.mrb[0].mxu0
    %v436 = vadd.f32 %v137, %v435
    %v437 = vpop.f32.mrb[0].mxu0
    %v438 = vadd.f32 %v133, %v437
    %v439 = vpop.f32.mrb[0].mxu0
    %v440 = vadd.f32 %v137, %v439
    %441 = vmatprep.mubr.bf16.mxu0 0
    %442 = vmatmul.mubr.bf16.gmra.mrb[0].mxu0 %v159
    %v443 = vpop.f32.mrb[0].mxu0
    %v444 = vadd.f32 %v133, %v443
    %v445 = vpop.f32.mrb[0].mxu0
    %v446 = vadd.f32 %v137, %v445
    %v447 = vpop.f32.mrb[0].mxu0
    %v448 = vadd.f32 %v133, %v447
    %v449 = vpop.f32.mrb[0].mxu0
    %v450 = vadd.f32 %v137, %v449
    %451 = vmatprep.mubr.bf16.mxu0 0
    %452 = vmatmul.mubr.bf16.gmra.mrb[0].mxu0 %v160
    %v453 = vpop.f32.mrb[0].mxu0
    %v454 = vadd.f32 %v133, %v453
    %v455 = vpop.f32.mrb[0].mxu0
    %v456 = vadd.f32 %v137, %v455
    %v457 = vpop.f32.mrb[0].mxu0
    %v458 = vadd.f32 %v133, %v457
    %v459 = vpop.f32.mrb[0].mxu0
    %v460 = vadd.f32 %v137, %v459
    %461 = vmatprep.mubr.bf16.mxu0 0
    %462 = vmatmul.mubr.bf16.gmra.mrb[0].mxu0 %v161
    %v463 = vpop.f32.mrb[0].mxu0
    %v464 = vadd.f32 %v133, %v463
    %v465 = vpop.f32.mrb[0].mxu0
    %v466 = vadd.f32 %v137, %v465
    %v467 = vpop.f32.mrb[0].mxu0
    %v468 = vadd.f32 %v133, %v467
    %v469 = vpop.f32.mrb[0].mxu0
    %v470 = vadd.f32 %v137, %v469
    %471 = vdwg.mxu0
    %472 = vst [vmem:[#allocation2] sm:$0xff] %v361
    %473 = vst [vmem:[#allocation2 + $0x8] sm:$0xff] %v363
    %474 = vst [vmem:[#allocation2 + $0x10] sm:$0xff] %v434
    %475 = vst [vmem:[#allocation2 + $0x18] sm:$0xff] %v436
    %476 = vst [vmem:[#allocation2 + $0x20] sm:$0xff] %v365
    %477 = vst [vmem:[#allocation2 + $0x28] sm:$0xff] %v367
    %478 = vst [vmem:[#allocation2 + $0x30] sm:$0xff] %v438
    %479 = vst [vmem:[#allocation2 + $0x38] sm:$0xff] %v440
    %480 = vst [vmem:[#allocation2 + $0x40] sm:$0xff] %v371
    %481 = vst [vmem:[#allocation2 + $0x48] sm:$0xff] %v373
    %482 = vst [vmem:[#allocation2 + $0x50] sm:$0xff] %v444
    %483 = vst [vmem:[#allocation2 + $0x58] sm:$0xff] %v446
    %484 = vst [vmem:[#allocation2 + $0x60] sm:$0xff] %v375
    %485 = vst [vmem:[#allocation2 + $0x68] sm:$0xff] %v377
    %486 = vst [vmem:[#allocation2 + $0x70] sm:$0xff] %v448
    %487 = vst [vmem:[#allocation2 + $0x78] sm:$0xff] %v450
    %488 = vst [vmem:[#allocation2 + $0x80] sm:$0xff] %v381
    %489 = vst [vmem:[#allocation2 + $0x88] sm:$0xff] %v383
    %490 = vst [vmem:[#allocation2 + $0x90] sm:$0xff] %v454
    %491 = vst [vmem:[#allocation2 + $0x98] sm:$0xff] %v456
    %492 = vst [vmem:[#allocation2 + $0xa0] sm:$0xff] %v385
    %493 = vst [vmem:[#allocation2 + $0xa8] sm:$0xff] %v387
    %494 = vst [vmem:[#allocation2 + $0xb0] sm:$0xff] %v458
    %495 = vst [vmem:[#allocation2 + $0xb8] sm:$0xff] %v460
    %496 = vst [vmem:[#allocation2 + $0xc0] sm:$0xff] %v391
    %497 = vst [vmem:[#allocation2 + $0xc8] sm:$0xff] %v393
    %498 = vst [vmem:[#allocation2 + $0xd0] sm:$0xff] %v464
    %499 = vst [vmem:[#allocation2 + $0xd8] sm:$0xff] %v466
    %500 = vst [vmem:[#allocation2 + $0xe0] sm:$0xff] %v395
    %501 = vst [vmem:[#allocation2 + $0xe8] sm:$0xff] %v397
    %502 = vst [vmem:[#allocation2 + $0xf0] sm:$0xff] %v468
    %503 = vst [vmem:[#allocation2 + $0xf8] sm:$0xff] %v470
    %v504 = vld [vmem:[#allocation8] sm:$0xff]
    %v505 = vld [vmem:[#allocation8 + $0x8] sm:$0xff]
    %v506 = vld [vmem:[#allocation8 + $0x10] sm:$0xff]
    %v507 = vld [vmem:[#allocation8 + $0x18] sm:$0xff]
    %v508 = vld [vmem:[#allocation8 + $0x20] sm:$0xff]
    %v509 = vld [vmem:[#allocation8 + $0x28] sm:$0xff]
    %v510 = vld [vmem:[#allocation8 + $0x30] sm:$0xff]
    %v511 = vld [vmem:[#allocation8 + $0x38] sm:$0xff]
    %v512 = vld [vmem:[#allocation8 + $0x40] sm:$0xff]
    %v513 = vld [vmem:[#allocation8 + $0x48] sm:$0xff]
    %v514 = vld [vmem:[#allocation8 + $0x50] sm:$0xff]
    %v515 = vld [vmem:[#allocation8 + $0x58] sm:$0xff]
    %v516 = vld [vmem:[#allocation8 + $0x60] sm:$0xff]
    %v517 = vld [vmem:[#allocation8 + $0x68] sm:$0xff]
    %v518 = vld [vmem:[#allocation8 + $0x70] sm:$0xff]
    %v519 = vld [vmem:[#allocation8 + $0x78] sm:$0xff]
    %v520 = vld [vmem:[#allocation8 + $0x80] sm:$0xff]
    %v521 = vld [vmem:[#allocation8 + $0x88] sm:$0xff]
    %v522 = vld [vmem:[#allocation8 + $0x90] sm:$0xff]
    %v523 = vld [vmem:[#allocation8 + $0x98] sm:$0xff]
    %v524 = vld [vmem:[#allocation8 + $0xa0] sm:$0xff]
    %v525 = vld [vmem:[#allocation8 + $0xa8] sm:$0xff]
    %v526 = vld [vmem:[#allocation8 + $0xb0] sm:$0xff]
    %v527 = vld [vmem:[#allocation8 + $0xb8] sm:$0xff]
    %v528 = vld [vmem:[#allocation8 + $0xc0] sm:$0xff]
    %v529 = vld [vmem:[#allocation8 + $0xc8] sm:$0xff]
    %v530 = vld [vmem:[#allocation8 + $0xd0] sm:$0xff]
    %v531 = vld [vmem:[#allocation8 + $0xd8] sm:$0xff]
    %v532 = vld [vmem:[#allocation8 + $0xe0] sm:$0xff]
    %v533 = vld [vmem:[#allocation8 + $0xe8] sm:$0xff]
    %v534 = vld [vmem:[#allocation8 + $0xf0] sm:$0xff]
    %v535 = vld [vmem:[#allocation8 + $0xf8] sm:$0xff]
    %v536 = vld [vmem:[#allocation2] sm:$0xff]
    %v537 = vld [vmem:[#allocation2 + $0x8] sm:$0xff]
    %v538 = vld [vmem:[#allocation2 + $0x10] sm:$0xff]
    %v539 = vld [vmem:[#allocation2 + $0x18] sm:$0xff]
    %v572 = vunpack.c.l.b16 %v504
    %v573 = vunpack.c.h.b16 %v504
    %v574 = vunpack.c.l.b16 %v505
    %v575 = vunpack.c.h.b16 %v505
    %v576 = vunpack.c.l.b16 %v506
    %v577 = vunpack.c.h.b16 %v506
    %v578 = vunpack.c.l.b16 %v507
    %v579 = vunpack.c.h.b16 %v507
    %v580 = vunpack.c.l.b16 %v508
    %v581 = vunpack.c.h.b16 %v508
    %v582 = vunpack.c.l.b16 %v509
    %v583 = vunpack.c.h.b16 %v509
    %v584 = vunpack.c.l.b16 %v510
    %v585 = vunpack.c.h.b16 %v510
    %v586 = vunpack.c.l.b16 %v511
    %v587 = vunpack.c.h.b16 %v511
    %v588 = vunpack.c.l.b16 %v512
    %v589 = vunpack.c.h.b16 %v512
    %v590 = vunpack.c.l.b16 %v513
    %v591 = vunpack.c.h.b16 %v513
    %v592 = vunpack.c.l.b16 %v514
    %v593 = vunpack.c.h.b16 %v514
    %v594 = vunpack.c.l.b16 %v515
    %v595 = vunpack.c.h.b16 %v515
    %v596 = vunpack.c.l.b16 %v516
    %v597 = vunpack.c.h.b16 %v516
    %v598 = vunpack.c.l.b16 %v517
    %v599 = vunpack.c.h.b16 %v517
    %v600 = vunpack.c.l.b16 %v518
    %v601 = vunpack.c.h.b16 %v518
    %v602 = vunpack.c.l.b16 %v519
    %v603 = vunpack.c.h.b16 %v519
    %v604 = vunpack.c.l.b16 %v520
    %v605 = vunpack.c.h.b16 %v520
    %v606 = vunpack.c.l.b16 %v521
    %v607 = vunpack.c.h.b16 %v521
    %v608 = vunpack.c.l.b16 %v522
    %v609 = vunpack.c.h.b16 %v522
    %v610 = vunpack.c.l.b16 %v523
    %v611 = vunpack.c.h.b16 %v523
    %v612 = vunpack.c.l.b16 %v524
    %v613 = vunpack.c.h.b16 %v524
    %v614 = vunpack.c.l.b16 %v525
    %v615 = vunpack.c.h.b16 %v525
    %v616 = vunpack.c.l.b16 %v526
    %v617 = vunpack.c.h.b16 %v526
    %v618 = vunpack.c.l.b16 %v527
    %v619 = vunpack.c.h.b16 %v527
    %v620 = vunpack.c.l.b16 %v528
    %v621 = vunpack.c.h.b16 %v528
    %v622 = vunpack.c.l.b16 %v529
    %v623 = vunpack.c.h.b16 %v529
    %v624 = vunpack.c.l.b16 %v530
    %v625 = vunpack.c.h.b16 %v530
    %v626 = vunpack.c.l.b16 %v531
    %v627 = vunpack.c.h.b16 %v531
    %v628 = vunpack.c.l.b16 %v532
    %v629 = vunpack.c.h.b16 %v532
    %v630 = vunpack.c.l.b16 %v533
    %v631 = vunpack.c.h.b16 %v533
    %v632 = vunpack.c.l.b16 %v534
    %v633 = vunpack.c.h.b16 %v534
    %v634 = vunpack.c.l.b16 %v535
    %v635 = vunpack.c.h.b16 %v535
    %v636 = vpack.c.b16 %v576, %v572
    %v637 = vpack.c.b16 %v577, %v573
    %v638 = vpack.c.b16 %v578, %v574
    %v639 = vpack.c.b16 %v579, %v575
    %v640 = vpack.c.b16 %v584, %v580
    %v641 = vpack.c.b16 %v585, %v581
    %v642 = vpack.c.b16 %v586, %v582
    %v643 = vpack.c.b16 %v587, %v583
    %v644 = vpack.c.b16 %v592, %v588
    %v645 = vpack.c.b16 %v593, %v589
    %v646 = vpack.c.b16 %v594, %v590
    %v647 = vpack.c.b16 %v595, %v591
    %v648 = vpack.c.b16 %v600, %v596
    %v649 = vpack.c.b16 %v601, %v597
    %v650 = vpack.c.b16 %v602, %v598
    %v651 = vpack.c.b16 %v603, %v599
    %v652 = vpack.c.b16 %v608, %v604
    %v653 = vpack.c.b16 %v609, %v605
    %v654 = vpack.c.b16 %v610, %v606
    %v655 = vpack.c.b16 %v611, %v607
    %v656 = vpack.c.b16 %v616, %v612
    %v657 = vpack.c.b16 %v617, %v613
    %v658 = vpack.c.b16 %v618, %v614
    %v659 = vpack.c.b16 %v619, %v615
    %v660 = vpack.c.b16 %v624, %v620
    %v661 = vpack.c.b16 %v625, %v621
    %v662 = vpack.c.b16 %v626, %v622
    %v663 = vpack.c.b16 %v627, %v623
    %v664 = vpack.c.b16 %v632, %v628
    %v665 = vpack.c.b16 %v633, %v629
    %v666 = vpack.c.b16 %v634, %v630
    %v667 = vpack.c.b16 %v635, %v631
    %700 = vmatprep.subr.bf16.mxu0 %v637
    %701 = vmatpush1.bf16.msra.mxu0 %v636
    %702 = vmatprep.subr.bf16.mxu0 %v641
    %703 = vmatpush1.bf16.msra.mxu0 %v640
    %704 = vmatprep.subr.bf16.mxu0 %v645
    %705 = vmatpush1.bf16.msra.mxu0 %v644
    %706 = vmatprep.subr.bf16.mxu0 %v649
    %707 = vmatpush1.bf16.msra.mxu0 %v648
    %708 = vmatprep.subr.bf16.mxu0 %v653
    %709 = vmatpush1.bf16.msra.mxu0 %v652
    %710 = vmatprep.subr.bf16.mxu0 %v657
    %711 = vmatpush1.bf16.msra.mxu0 %v656
    %712 = vmatprep.subr.bf16.mxu0 %v661
    %713 = vmatpush1.bf16.msra.mxu0 %v660
    %714 = vmatprep.subr.bf16.mxu0 %v665
    %715 = vmatpush1.bf16.msra.mxu0 %v664
    %716 = vmatprep.subr.bf16.mxu0 0
    %717 = vmatpush1.bf16.msra.mxu0 0
    %718 = vmatprep.subr.bf16.mxu0 0
    %719 = vmatpush1.bf16.msra.mxu0 0
    %720 = vmatprep.subr.bf16.mxu0 0
    %721 = vmatpush1.bf16.msra.mxu0 0
    %722 = vmatprep.subr.bf16.mxu0 0
    %723 = vmatpush1.bf16.msra.mxu0 0
    %724 = vmatprep.subr.bf16.mxu0 0
    %725 = vmatpush1.bf16.msra.mxu0 0
    %726 = vmatprep.subr.bf16.mxu0 0
    %727 = vmatpush1.bf16.msra.mxu0 0
    %728 = vmatprep.subr.bf16.mxu0 0
    %729 = vmatpush1.bf16.msra.mxu0 0
    %730 = vmatprep.subr.bf16.mxu0 0
    %731 = vmatpush1.bf16.msra.mxu0 0
    %732 = vmatprep.mubr.bf16.mxu0 0
    %733 = vmatmul.mubr.bf16.gmra.mrb[0].mxu0 0
    %v734 = vpop.f32.mrb[0].mxu0
    %v735 = vadd.f32 0.0, %v734
    %v736 = vpop.f32.mrb[0].mxu0
    %v737 = vadd.f32 0.0, %v736
    %v738 = vpop.f32.mrb[0].mxu0
    %v739 = vpop.f32.mrb[0].mxu0
    %740 = vdwg.mxu0
    %741 = vmatprep.subr.bf16.mxu0 %v639
    %742 = vmatpush1.bf16.msra.mxu0 %v638
    %743 = vmatprep.subr.bf16.mxu0 %v643
    %744 = vmatpush1.bf16.msra.mxu0 %v642
    %745 = vmatprep.subr.bf16.mxu0 %v647
    %746 = vmatpush1.bf16.msra.mxu0 %v646
    %747 = vmatprep.subr.bf16.mxu0 %v651
    %748 = vmatpush1.bf16.msra.mxu0 %v650
    %749 = vmatprep.subr.bf16.mxu0 %v655
    %750 = vmatpush1.bf16.msra.mxu0 %v654
    %751 = vmatprep.subr.bf16.mxu0 %v659
    %752 = vmatpush1.bf16.msra.mxu0 %v658
    %753 = vmatprep.subr.bf16.mxu0 %v663
    %754 = vmatpush1.bf16.msra.mxu0 %v662
    %755 = vmatprep.subr.bf16.mxu0 %v667
    %756 = vmatpush1.bf16.msra.mxu0 %v666
    %757 = vmatprep.subr.bf16.mxu0 0
    %758 = vmatpush1.bf16.msra.mxu0 0
    %759 = vmatprep.subr.bf16.mxu0 0
    %760 = vmatpush1.bf16.msra.mxu0 0
    %761 = vmatprep.subr.bf16.mxu0 0
    %762 = vmatpush1.bf16.msra.mxu0 0
    %763 = vmatprep.subr.bf16.mxu0 0
    %764 = vmatpush1.bf16.msra.mxu0 0
    %765 = vmatprep.subr.bf16.mxu0 0
    %766 = vmatpush1.bf16.msra.mxu0 0
    %767 = vmatprep.subr.bf16.mxu0 0
    %768 = vmatpush1.bf16.msra.mxu0 0
    %769 = vmatprep.subr.bf16.mxu0 0
    %770 = vmatpush1.bf16.msra.mxu0 0
    %771 = vmatprep.subr.bf16.mxu0 0
    %772 = vmatpush1.bf16.msra.mxu0 0
    %773 = vmatprep.mubr.bf16.mxu0 0
    %774 = vmatmul.mubr.bf16.gmra.mrb[0].mxu0 0
    %v775 = vpop.f32.mrb[0].mxu0
    %v776 = vadd.f32 0.0, %v775
    %v777 = vpop.f32.mrb[0].mxu0
    %v778 = vadd.f32 0.0, %v777
    %v779 = vpop.f32.mrb[0].mxu0
    %v780 = vpop.f32.mrb[0].mxu0
    %781 = vdwg.mxu0
    %v782 = vadd.f32 %v536, %v735
    %v783 = vadd.f32 %v537, %v737
    %v784 = vadd.f32 %v538, %v776
    %v785 = vadd.f32 %v539, %v778
    %v786 = vxor.u32 %v782, 2147483648
    %v787 = vmul.f32 %v786, 1.442695
    %v788 = vpow.pop %v787
    %v789 = vadd.f32 %v788, 1.0
    %v790 = vrcp.pop %v789
    %v791 = vmul.f32 1.0, %v790
    %v792 = vxor.u32 %v783, 2147483648
    %v793 = vmul.f32 %v792, 1.442695
    %v794 = vpow.pop %v793
    %v795 = vadd.f32 %v794, 1.0
    %v796 = vrcp.pop %v795
    %v797 = vmul.f32 1.0, %v796
    %v798 = vtanh.pop %v784
    %v799 = vxor.u32 %v785, 2147483648
    %v800 = vmul.f32 %v799, 1.442695
    %v801 = vpow.pop %v800
    %v802 = vadd.f32 %v801, 1.0
    %v803 = vrcp.pop %v802
    %v804 = vmul.f32 1.0, %v803
    %v805 = vmul.f32 %v797, 0.0
    %v806 = vmul.f32 %v791, %v798
    %v807 = vadd.f32 %v805, %v806
    %v808 = vtanh.pop %v807
    %v809 = vmul.f32 %v804, %v808
    %s810 = scalar_lea.vmem [#allocation2], 32
    %v811 = vld [vmem:[%s810] sm:$0xff]
    %v812 = vld [vmem:[%s810 + $0x8] sm:$0xff]
    %v813 = vld [vmem:[%s810 + $0x10] sm:$0xff]
    %v814 = vld [vmem:[%s810 + $0x18] sm:$0xff]
    %v815 = vpack.c.bf16 %v809, %v809
    %816 = vmatprep.subr.bf16.mxu0 %v637
    %817 = vmatpush1.bf16.msra.mxu0 %v636
    %818 = vmatprep.subr.bf16.mxu0 %v641
    %819 = vmatpush1.bf16.msra.mxu0 %v640
    %820 = vmatprep.subr.bf16.mxu0 %v645
    %821 = vmatpush1.bf16.msra.mxu0 %v644
    %822 = vmatprep.subr.bf16.mxu0 %v649
    %823 = vmatpush1.bf16.msra.mxu0 %v648
    %824 = vmatprep.subr.bf16.mxu0 %v653
    %825 = vmatpush1.bf16.msra.mxu0 %v652
    %826 = vmatprep.subr.bf16.mxu0 %v657
    %827 = vmatpush1.bf16.msra.mxu0 %v656
    %828 = vmatprep.subr.bf16.mxu0 %v661
    %829 = vmatpush1.bf16.msra.mxu0 %v660
    %830 = vmatprep.subr.bf16.mxu0 %v665
    %831 = vmatpush1.bf16.msra.mxu0 %v664
    %832 = vmatprep.subr.bf16.mxu0 0
    %833 = vmatpush1.bf16.msra.mxu0 0
    %834 = vmatprep.subr.bf16.mxu0 0
    %835 = vmatpush1.bf16.msra.mxu0 0
    %836 = vmatprep.subr.bf16.mxu0 0
    %837 = vmatpush1.bf16.msra.mxu0 0
    %838 = vmatprep.subr.bf16.mxu0 0
    %839 = vmatpush1.bf16.msra.mxu0 0
    %840 = vmatprep.subr.bf16.mxu0 0
    %841 = vmatpush1.bf16.msra.mxu0 0
    %842 = vmatprep.subr.bf16.mxu0 0
    %843 = vmatpush1.bf16.msra.mxu0 0
    %844 = vmatprep.subr.bf16.mxu0 0
    %845 = vmatpush1.bf16.msra.mxu0 0
    %846 = vmatprep.subr.bf16.mxu0 0
    %847 = vmatpush1.bf16.msra.mxu0 0
    %848 = vmatprep.mubr.bf16.mxu0 0
    %849 = vmatmul.mubr.bf16.gmra.mrb[0].mxu0 %v815
    %v850 = vpop.f32.mrb[0].mxu0
    %v851 = vadd.f32 0.0, %v850
    %v852 = vpop.f32.mrb[0].mxu0
    %v853 = vadd.f32 0.0, %v852
    %v854 = vpop.f32.mrb[0].mxu0
    %v855 = vpop.f32.mrb[0].mxu0
    %856 = vdwg.mxu0
    %857 = vmatprep.subr.bf16.mxu0 %v639
    %858 = vmatpush1.bf16.msra.mxu0 %v638
    %859 = vmatprep.subr.bf16.mxu0 %v643
    %860 = vmatpush1.bf16.msra.mxu0 %v642
    %861 = vmatprep.subr.bf16.mxu0 %v647
    %862 = vmatpush1.bf16.msra.mxu0 %v646
    %863 = vmatprep.subr.bf16.mxu0 %v651
    %864 = vmatpush1.bf16.msra.mxu0 %v650
    %865 = vmatprep.subr.bf16.mxu0 %v655
    %866 = vmatpush1.bf16.msra.mxu0 %v654
    %867 = vmatprep.subr.bf16.mxu0 %v659
    %868 = vmatpush1.bf16.msra.mxu0 %v658
    %869 = vmatprep.subr.bf16.mxu0 %v663
    %870 = vmatpush1.bf16.msra.mxu0 %v662
    %871 = vmatprep.subr.bf16.mxu0 %v667
    %872 = vmatpush1.bf16.msra.mxu0 %v666
    %873 = vmatprep.subr.bf16.mxu0 0
    %874 = vmatpush1.bf16.msra.mxu0 0
    %875 = vmatprep.subr.bf16.mxu0 0
    %876 = vmatpush1.bf16.msra.mxu0 0
    %877 = vmatprep.subr.bf16.mxu0 0
    %878 = vmatpush1.bf16.msra.mxu0 0
    %879 = vmatprep.subr.bf16.mxu0 0
    %880 = vmatpush1.bf16.msra.mxu0 0
    %881 = vmatprep.subr.bf16.mxu0 0
    %882 = vmatpush1.bf16.msra.mxu0 0
    %883 = vmatprep.subr.bf16.mxu0 0
    %884 = vmatpush1.bf16.msra.mxu0 0
    %885 = vmatprep.subr.bf16.mxu0 0
    %886 = vmatpush1.bf16.msra.mxu0 0
    %887 = vmatprep.subr.bf16.mxu0 0
    %888 = vmatpush1.bf16.msra.mxu0 0
    %889 = vmatprep.mubr.bf16.mxu0 0
    %890 = vmatmul.mubr.bf16.gmra.mrb[0].mxu0 %v815
    %v891 = vpop.f32.mrb[0].mxu0
    %v892 = vadd.f32 0.0, %v891
    %v893 = vpop.f32.mrb[0].mxu0
    %v894 = vadd.f32 0.0, %v893
    %v895 = vpop.f32.mrb[0].mxu0
    %v896 = vpop.f32.mrb[0].mxu0
    %897 = vdwg.mxu0
    %v898 = vadd.f32 %v811, %v851
    %v899 = vadd.f32 %v812, %v853
    %v900 = vadd.f32 %v813, %v892
    %v901 = vadd.f32 %v814, %v894
    %v902 = vxor.u32 %v898, 2147483648
    %v903 = vmul.f32 %v902, 1.442695
    %v904 = vpow.pop %v903
    %v905 = vadd.f32 %v904, 1.0
    %v906 = vrcp.pop %v905
    %v907 = vmul.f32 1.0, %v906
    %v908 = vxor.u32 %v899, 2147483648
    %v909 = vmul.f32 %v908, 1.442695
    %v910 = vpow.pop %v909
    %v911 = vadd.f32 %v910, 1.0
    %v912 = vrcp.pop %v911
    %v913 = vmul.f32 1.0, %v912
    %v914 = vtanh.pop %v900
    %v915 = vxor.u32 %v901, 2147483648
    %v916 = vmul.f32 %v915, 1.442695
    %v917 = vpow.pop %v916
    %v918 = vadd.f32 %v917, 1.0
    %v919 = vrcp.pop %v918
    %v920 = vmul.f32 1.0, %v919
    %v921 = vmul.f32 %v913, %v807
    %v922 = vmul.f32 %v907, %v914
    %v923 = vadd.f32 %v921, %v922
    %v924 = vtanh.pop %v923
    %v925 = vmul.f32 %v920, %v924
    %s926 = scalar_lea.vmem [#allocation2], 64
    %v927 = vld [vmem:[%s926] sm:$0xff]
    %v928 = vld [vmem:[%s926 + $0x8] sm:$0xff]
    %v929 = vld [vmem:[%s926 + $0x10] sm:$0xff]
    %v930 = vld [vmem:[%s926 + $0x18] sm:$0xff]
    %v931 = vpack.c.bf16 %v925, %v925
    %932 = vmatprep.subr.bf16.mxu0 %v637
    %933 = vmatpush1.bf16.msra.mxu0 %v636
    %934 = vmatprep.subr.bf16.mxu0 %v641
    %935 = vmatpush1.bf16.msra.mxu0 %v640
    %936 = vmatprep.subr.bf16.mxu0 %v645
    %937 = vmatpush1.bf16.msra.mxu0 %v644
    %938 = vmatprep.subr.bf16.mxu0 %v649
    %939 = vmatpush1.bf16.msra.mxu0 %v648
    %940 = vmatprep.subr.bf16.mxu0 %v653
    %941 = vmatpush1.bf16.msra.mxu0 %v652
    %942 = vmatprep.subr.bf16.mxu0 %v657
    %943 = vmatpush1.bf16.msra.mxu0 %v656
    %944 = vmatprep.subr.bf16.mxu0 %v661
    %945 = vmatpush1.bf16.msra.mxu0 %v660
    %946 = vmatprep.subr.bf16.mxu0 %v665
    %947 = vmatpush1.bf16.msra.mxu0 %v664
    %948 = vmatprep.subr.bf16.mxu0 0
    %949 = vmatpush1.bf16.msra.mxu0 0
    %950 = vmatprep.subr.bf16.mxu0 0
    %951 = vmatpush1.bf16.msra.mxu0 0
    %952 = vmatprep.subr.bf16.mxu0 0
    %953 = vmatpush1.bf16.msra.mxu0 0
    %954 = vmatprep.subr.bf16.mxu0 0
    %955 = vmatpush1.bf16.msra.mxu0 0
    %956 = vmatprep.subr.bf16.mxu0 0
    %957 = vmatpush1.bf16.msra.mxu0 0
    %958 = vmatprep.subr.bf16.mxu0 0
    %959 = vmatpush1.bf16.msra.mxu0 0
    %960 = vmatprep.subr.bf16.mxu0 0
    %961 = vmatpush1.bf16.msra.mxu0 0
    %962 = vmatprep.subr.bf16.mxu0 0
    %963 = vmatpush1.bf16.msra.mxu0 0
    %964 = vmatprep.mubr.bf16.mxu0 0
    %965 = vmatmul.mubr.bf16.gmra.mrb[0].mxu0 %v931
    %v966 = vpop.f32.mrb[0].mxu0
    %v967 = vadd.f32 0.0, %v966
    %v968 = vpop.f32.mrb[0].mxu0
    %v969 = vadd.f32 0.0, %v968
    %v970 = vpop.f32.mrb[0].mxu0
    %v971 = vpop.f32.mrb[0].mxu0
    %972 = vdwg.mxu0
    %973 = vmatprep.subr.bf16.mxu0 %v639
    %974 = vmatpush1.bf16.msra.mxu0 %v638
    %975 = vmatprep.subr.bf16.mxu0 %v643
    %976 = vmatpush1.bf16.msra.mxu0 %v642
    %977 = vmatprep.subr.bf16.mxu0 %v647
    %978 = vmatpush1.bf16.msra.mxu0 %v646
    %979 = vmatprep.subr.bf16.mxu0 %v651
    %980 = vmatpush1.bf16.msra.mxu0 %v650
    %981 = vmatprep.subr.bf16.mxu0 %v655
    %982 = vmatpush1.bf16.msra.mxu0 %v654
    %983 = vmatprep.subr.bf16.mxu0 %v659
    %984 = vmatpush1.bf16.msra.mxu0 %v658
    %985 = vmatprep.subr.bf16.mxu0 %v663
    %986 = vmatpush1.bf16.msra.mxu0 %v662
    %987 = vmatprep.subr.bf16.mxu0 %v667
    %988 = vmatpush1.bf16.msra.mxu0 %v666
    %989 = vmatprep.subr.bf16.mxu0 0
    %990 = vmatpush1.bf16.msra.mxu0 0
    %991 = vmatprep.subr.bf16.mxu0 0
    %992 = vmatpush1.bf16.msra.mxu0 0
    %993 = vmatprep.subr.bf16.mxu0 0
    %994 = vmatpush1.bf16.msra.mxu0 0
    %995 = vmatprep.subr.bf16.mxu0 0
    %996 = vmatpush1.bf16.msra.mxu0 0
    %997 = vmatprep.subr.bf16.mxu0 0
    %998 = vmatpush1.bf16.msra.mxu0 0
    %999 = vmatprep.subr.bf16.mxu0 0
    %1000 = vmatpush1.bf16.msra.mxu0 0
    %1001 = vmatprep.subr.bf16.mxu0 0
    %1002 = vmatpush1.bf16.msra.mxu0 0
    %1003 = vmatprep.subr.bf16.mxu0 0
    %1004 = vmatpush1.bf16.msra.mxu0 0
    %1005 = vmatprep.mubr.bf16.mxu0 0
    %1006 = vmatmul.mubr.bf16.gmra.mrb[0].mxu0 %v931
    %v1007 = vpop.f32.mrb[0].mxu0
    %v1008 = vadd.f32 0.0, %v1007
    %v1009 = vpop.f32.mrb[0].mxu0
    %v1010 = vadd.f32 0.0, %v1009
    %v1011 = vpop.f32.mrb[0].mxu0
    %v1012 = vpop.f32.mrb[0].mxu0
    %1013 = vdwg.mxu0
    %v1014 = vadd.f32 %v927, %v967
    %v1015 = vadd.f32 %v928, %v969
    %v1016 = vadd.f32 %v929, %v1008
    %v1017 = vadd.f32 %v930, %v1010
    %v1018 = vxor.u32 %v1014, 2147483648
    %v1019 = vmul.f32 %v1018, 1.442695
    %v1020 = vpow.pop %v1019
    %v1021 = vadd.f32 %v1020, 1.0
    %v1022 = vrcp.pop %v1021
    %v1023 = vmul.f32 1.0, %v1022
    %v1024 = vxor.u32 %v1015, 2147483648
    %v1025 = vmul.f32 %v1024, 1.442695
    %v1026 = vpow.pop %v1025
    %v1027 = vadd.f32 %v1026, 1.0
    %v1028 = vrcp.pop %v1027
    %v1029 = vmul.f32 1.0, %v1028
    %v1030 = vtanh.pop %v1016
    %v1031 = vxor.u32 %v1017, 2147483648
    %v1032 = vmul.f32 %v1031, 1.442695
    %v1033 = vpow.pop %v1032
    %v1034 = vadd.f32 %v1033, 1.0
    %v1035 = vrcp.pop %v1034
    %v1036 = vmul.f32 1.0, %v1035
    %v1037 = vmul.f32 %v1029, %v923
    %v1038 = vmul.f32 %v1023, %v1030
    %v1039 = vadd.f32 %v1037, %v1038
    %v1040 = vtanh.pop %v1039
    %v1041 = vmul.f32 %v1036, %v1040
    %s1042 = scalar_lea.vmem [#allocation2], 96
    %v1043 = vld [vmem:[%s1042] sm:$0xff]
    %v1044 = vld [vmem:[%s1042 + $0x8] sm:$0xff]
    %v1045 = vld [vmem:[%s1042 + $0x10] sm:$0xff]
    %v1046 = vld [vmem:[%s1042 + $0x18] sm:$0xff]
    %v1047 = vpack.c.bf16 %v1041, %v1041
    %1048 = vmatprep.subr.bf16.mxu0 %v637
    %1049 = vmatpush1.bf16.msra.mxu0 %v636
    %1050 = vmatprep.subr.bf16.mxu0 %v641
    %1051 = vmatpush1.bf16.msra.mxu0 %v640
    %1052 = vmatprep.subr.bf16.mxu0 %v645
    %1053 = vmatpush1.bf16.msra.mxu0 %v644
    %1054 = vmatprep.subr.bf16.mxu0 %v649
    %1055 = vmatpush1.bf16.msra.mxu0 %v648
    %1056 = vmatprep.subr.bf16.mxu0 %v653
    %1057 = vmatpush1.bf16.msra.mxu0 %v652
    %1058 = vmatprep.subr.bf16.mxu0 %v657
    %1059 = vmatpush1.bf16.msra.mxu0 %v656
    %1060 = vmatprep.subr.bf16.mxu0 %v661
    %1061 = vmatpush1.bf16.msra.mxu0 %v660
    %1062 = vmatprep.subr.bf16.mxu0 %v665
    %1063 = vmatpush1.bf16.msra.mxu0 %v664
    %1064 = vmatprep.subr.bf16.mxu0 0
    %1065 = vmatpush1.bf16.msra.mxu0 0
    %1066 = vmatprep.subr.bf16.mxu0 0
    %1067 = vmatpush1.bf16.msra.mxu0 0
    %1068 = vmatprep.subr.bf16.mxu0 0
    %1069 = vmatpush1.bf16.msra.mxu0 0
    %1070 = vmatprep.subr.bf16.mxu0 0
    %1071 = vmatpush1.bf16.msra.mxu0 0
    %1072 = vmatprep.subr.bf16.mxu0 0
    %1073 = vmatpush1.bf16.msra.mxu0 0
    %1074 = vmatprep.subr.bf16.mxu0 0
    %1075 = vmatpush1.bf16.msra.mxu0 0
    %1076 = vmatprep.subr.bf16.mxu0 0
    %1077 = vmatpush1.bf16.msra.mxu0 0
    %1078 = vmatprep.subr.bf16.mxu0 0
    %1079 = vmatpush1.bf16.msra.mxu0 0
    %1080 = vmatprep.mubr.bf16.mxu0 0
    %1081 = vmatmul.mubr.bf16.gmra.mrb[0].mxu0 %v1047
    %v1082 = vpop.f32.mrb[0].mxu0
    %v1083 = vadd.f32 0.0, %v1082
    %v1084 = vpop.f32.mrb[0].mxu0
    %v1085 = vadd.f32 0.0, %v1084
    %v1086 = vpop.f32.mrb[0].mxu0
    %v1087 = vpop.f32.mrb[0].mxu0
    %1088 = vdwg.mxu0
    %1089 = vmatprep.subr.bf16.mxu0 %v639
    %1090 = vmatpush1.bf16.msra.mxu0 %v638
    %1091 = vmatprep.subr.bf16.mxu0 %v643
    %1092 = vmatpush1.bf16.msra.mxu0 %v642
    %1093 = vmatprep.subr.bf16.mxu0 %v647
    %1094 = vmatpush1.bf16.msra.mxu0 %v646
    %1095 = vmatprep.subr.bf16.mxu0 %v651
    %1096 = vmatpush1.bf16.msra.mxu0 %v650
    %1097 = vmatprep.subr.bf16.mxu0 %v655
    %1098 = vmatpush1.bf16.msra.mxu0 %v654
    %1099 = vmatprep.subr.bf16.mxu0 %v659
    %1100 = vmatpush1.bf16.msra.mxu0 %v658
    %1101 = vmatprep.subr.bf16.mxu0 %v663
    %1102 = vmatpush1.bf16.msra.mxu0 %v662
    %1103 = vmatprep.subr.bf16.mxu0 %v667
    %1104 = vmatpush1.bf16.msra.mxu0 %v666
    %1105 = vmatprep.subr.bf16.mxu0 0
    %1106 = vmatpush1.bf16.msra.mxu0 0
    %1107 = vmatprep.subr.bf16.mxu0 0
    %1108 = vmatpush1.bf16.msra.mxu0 0
    %1109 = vmatprep.subr.bf16.mxu0 0
    %1110 = vmatpush1.bf16.msra.mxu0 0
    %1111 = vmatprep.subr.bf16.mxu0 0
    %1112 = vmatpush1.bf16.msra.mxu0 0
    %1113 = vmatprep.subr.bf16.mxu0 0
    %1114 = vmatpush1.bf16.msra.mxu0 0
    %1115 = vmatprep.subr.bf16.mxu0 0
    %1116 = vmatpush1.bf16.msra.mxu0 0
    %1117 = vmatprep.subr.bf16.mxu0 0
    %1118 = vmatpush1.bf16.msra.mxu0 0
    %1119 = vmatprep.subr.bf16.mxu0 0
    %1120 = vmatpush1.bf16.msra.mxu0 0
    %1121 = vmatprep.mubr.bf16.mxu0 0
    %1122 = vmatmul.mubr.bf16.gmra.mrb[0].mxu0 %v1047
    %v1123 = vpop.f32.mrb[0].mxu0
    %v1124 = vadd.f32 0.0, %v1123
    %v1125 = vpop.f32.mrb[0].mxu0
    %v1126 = vadd.f32 0.0, %v1125
    %v1127 = vpop.f32.mrb[0].mxu0
    %v1128 = vpop.f32.mrb[0].mxu0
    %1129 = vdwg.mxu0
    %v1130 = vadd.f32 %v1043, %v1083
    %v1131 = vadd.f32 %v1044, %v1085
    %v1132 = vadd.f32 %v1045, %v1124
    %v1133 = vadd.f32 %v1046, %v1126
    %v1134 = vxor.u32 %v1130, 2147483648
    %v1135 = vmul.f32 %v1134, 1.442695
    %v1136 = vpow.pop %v1135
    %v1137 = vadd.f32 %v1136, 1.0
    %v1138 = vrcp.pop %v1137
    %v1139 = vmul.f32 1.0, %v1138
    %v1140 = vxor.u32 %v1131, 2147483648
    %v1141 = vmul.f32 %v1140, 1.442695
    %v1142 = vpow.pop %v1141
    %v1143 = vadd.f32 %v1142, 1.0
    %v1144 = vrcp.pop %v1143
    %v1145 = vmul.f32 1.0, %v1144
    %v1146 = vtanh.pop %v1132
    %v1147 = vxor.u32 %v1133, 2147483648
    %v1148 = vmul.f32 %v1147, 1.442695
    %v1149 = vpow.pop %v1148
    %v1150 = vadd.f32 %v1149, 1.0
    %v1151 = vrcp.pop %v1150
    %v1152 = vmul.f32 1.0, %v1151
    %v1153 = vmul.f32 %v1145, %v1039
    %v1154 = vmul.f32 %v1139, %v1146
    %v1155 = vadd.f32 %v1153, %v1154
    %v1156 = vtanh.pop %v1155
    %v1157 = vmul.f32 %v1152, %v1156
    %s1158 = scalar_lea.vmem [#allocation2], 128
    %v1159 = vld [vmem:[%s1158] sm:$0xff]
    %v1160 = vld [vmem:[%s1158 + $0x8] sm:$0xff]
    %v1161 = vld [vmem:[%s1158 + $0x10] sm:$0xff]
    %v1162 = vld [vmem:[%s1158 + $0x18] sm:$0xff]
    %v1163 = vpack.c.bf16 %v1157, %v1157
    %1164 = vmatprep.subr.bf16.mxu0 %v637
    %1165 = vmatpush1.bf16.msra.mxu0 %v636
    %1166 = vmatprep.subr.bf16.mxu0 %v641
    %1167 = vmatpush1.bf16.msra.mxu0 %v640
    %1168 = vmatprep.subr.bf16.mxu0 %v645
    %1169 = vmatpush1.bf16.msra.mxu0 %v644
    %1170 = vmatprep.subr.bf16.mxu0 %v649
    %1171 = vmatpush1.bf16.msra.mxu0 %v648
    %1172 = vmatprep.subr.bf16.mxu0 %v653
    %1173 = vmatpush1.bf16.msra.mxu0 %v652
    %1174 = vmatprep.subr.bf16.mxu0 %v657
    %1175 = vmatpush1.bf16.msra.mxu0 %v656
    %1176 = vmatprep.subr.bf16.mxu0 %v661
    %1177 = vmatpush1.bf16.msra.mxu0 %v660
    %1178 = vmatprep.subr.bf16.mxu0 %v665
    %1179 = vmatpush1.bf16.msra.mxu0 %v664
    %1180 = vmatprep.subr.bf16.mxu0 0
    %1181 = vmatpush1.bf16.msra.mxu0 0
    %1182 = vmatprep.subr.bf16.mxu0 0
    %1183 = vmatpush1.bf16.msra.mxu0 0
    %1184 = vmatprep.subr.bf16.mxu0 0
    %1185 = vmatpush1.bf16.msra.mxu0 0
    %1186 = vmatprep.subr.bf16.mxu0 0
    %1187 = vmatpush1.bf16.msra.mxu0 0
    %1188 = vmatprep.subr.bf16.mxu0 0
    %1189 = vmatpush1.bf16.msra.mxu0 0
    %1190 = vmatprep.subr.bf16.mxu0 0
    %1191 = vmatpush1.bf16.msra.mxu0 0
    %1192 = vmatprep.subr.bf16.mxu0 0
    %1193 = vmatpush1.bf16.msra.mxu0 0
    %1194 = vmatprep.subr.bf16.mxu0 0
    %1195 = vmatpush1.bf16.msra.mxu0 0
    %1196 = vmatprep.mubr.bf16.mxu0 0
    %1197 = vmatmul.mubr.bf16.gmra.mrb[0].mxu0 %v1163
    %v1198 = vpop.f32.mrb[0].mxu0
    %v1199 = vadd.f32 0.0, %v1198
    %v1200 = vpop.f32.mrb[0].mxu0
    %v1201 = vadd.f32 0.0, %v1200
    %v1202 = vpop.f32.mrb[0].mxu0
    %v1203 = vpop.f32.mrb[0].mxu0
    %1204 = vdwg.mxu0
    %1205 = vmatprep.subr.bf16.mxu0 %v639
    %1206 = vmatpush1.bf16.msra.mxu0 %v638
    %1207 = vmatprep.subr.bf16.mxu0 %v643
    %1208 = vmatpush1.bf16.msra.mxu0 %v642
    %1209 = vmatprep.subr.bf16.mxu0 %v647
    %1210 = vmatpush1.bf16.msra.mxu0 %v646
    %1211 = vmatprep.subr.bf16.mxu0 %v651
    %1212 = vmatpush1.bf16.msra.mxu0 %v650
    %1213 = vmatprep.subr.bf16.mxu0 %v655
    %1214 = vmatpush1.bf16.msra.mxu0 %v654
    %1215 = vmatprep.subr.bf16.mxu0 %v659
    %1216 = vmatpush1.bf16.msra.mxu0 %v658
    %1217 = vmatprep.subr.bf16.mxu0 %v663
    %1218 = vmatpush1.bf16.msra.mxu0 %v662
    %1219 = vmatprep.subr.bf16.mxu0 %v667
    %1220 = vmatpush1.bf16.msra.mxu0 %v666
    %1221 = vmatprep.subr.bf16.mxu0 0
    %1222 = vmatpush1.bf16.msra.mxu0 0
    %1223 = vmatprep.subr.bf16.mxu0 0
    %1224 = vmatpush1.bf16.msra.mxu0 0
    %1225 = vmatprep.subr.bf16.mxu0 0
    %1226 = vmatpush1.bf16.msra.mxu0 0
    %1227 = vmatprep.subr.bf16.mxu0 0
    %1228 = vmatpush1.bf16.msra.mxu0 0
    %1229 = vmatprep.subr.bf16.mxu0 0
    %1230 = vmatpush1.bf16.msra.mxu0 0
    %1231 = vmatprep.subr.bf16.mxu0 0
    %1232 = vmatpush1.bf16.msra.mxu0 0
    %1233 = vmatprep.subr.bf16.mxu0 0
    %1234 = vmatpush1.bf16.msra.mxu0 0
    %1235 = vmatprep.subr.bf16.mxu0 0
    %1236 = vmatpush1.bf16.msra.mxu0 0
    %1237 = vmatprep.mubr.bf16.mxu0 0
    %1238 = vmatmul.mubr.bf16.gmra.mrb[0].mxu0 %v1163
    %v1239 = vpop.f32.mrb[0].mxu0
    %v1240 = vadd.f32 0.0, %v1239
    %v1241 = vpop.f32.mrb[0].mxu0
    %v1242 = vadd.f32 0.0, %v1241
    %v1243 = vpop.f32.mrb[0].mxu0
    %v1244 = vpop.f32.mrb[0].mxu0
    %1245 = vdwg.mxu0
    %v1246 = vadd.f32 %v1159, %v1199
    %v1247 = vadd.f32 %v1160, %v1201
    %v1248 = vadd.f32 %v1161, %v1240
    %v1249 = vadd.f32 %v1162, %v1242
    %v1250 = vxor.u32 %v1246, 2147483648
    %v1251 = vmul.f32 %v1250, 1.442695
    %v1252 = vpow.pop %v1251
    %v1253 = vadd.f32 %v1252, 1.0
    %v1254 = vrcp.pop %v1253
    %v1255 = vmul.f32 1.0, %v1254
    %v1256 = vxor.u32 %v1247, 2147483648
    %v1257 = vmul.f32 %v1256, 1.442695
    %v1258 = vpow.pop %v1257
    %v1259 = vadd.f32 %v1258, 1.0
    %v1260 = vrcp.pop %v1259
    %v1261 = vmul.f32 1.0, %v1260
    %v1262 = vtanh.pop %v1248
    %v1263 = vxor.u32 %v1249, 2147483648
    %v1264 = vmul.f32 %v1263, 1.442695
    %v1265 = vpow.pop %v1264
    %v1266 = vadd.f32 %v1265, 1.0
    %v1267 = vrcp.pop %v1266
    %v1268 = vmul.f32 1.0, %v1267
    %v1269 = vmul.f32 %v1261, %v1155
    %v1270 = vmul.f32 %v1255, %v1262
    %v1271 = vadd.f32 %v1269, %v1270
    %v1272 = vtanh.pop %v1271
    %v1273 = vmul.f32 %v1268, %v1272
    %s1274 = scalar_lea.vmem [#allocation2], 160
    %v1275 = vld [vmem:[%s1274] sm:$0xff]
    %v1276 = vld [vmem:[%s1274 + $0x8] sm:$0xff]
    %v1277 = vld [vmem:[%s1274 + $0x10] sm:$0xff]
    %v1278 = vld [vmem:[%s1274 + $0x18] sm:$0xff]
    %v1279 = vpack.c.bf16 %v1273, %v1273
    %1280 = vmatprep.subr.bf16.mxu0 %v637
    %1281 = vmatpush1.bf16.msra.mxu0 %v636
    %1282 = vmatprep.subr.bf16.mxu0 %v641
    %1283 = vmatpush1.bf16.msra.mxu0 %v640
    %1284 = vmatprep.subr.bf16.mxu0 %v645
    %1285 = vmatpush1.bf16.msra.mxu0 %v644
    %1286 = vmatprep.subr.bf16.mxu0 %v649
    %1287 = vmatpush1.bf16.msra.mxu0 %v648
    %1288 = vmatprep.subr.bf16.mxu0 %v653
    %1289 = vmatpush1.bf16.msra.mxu0 %v652
    %1290 = vmatprep.subr.bf16.mxu0 %v657
    %1291 = vmatpush1.bf16.msra.mxu0 %v656
    %1292 = vmatprep.subr.bf16.mxu0 %v661
    %1293 = vmatpush1.bf16.msra.mxu0 %v660
    %1294 = vmatprep.subr.bf16.mxu0 %v665
    %1295 = vmatpush1.bf16.msra.mxu0 %v664
    %1296 = vmatprep.subr.bf16.mxu0 0
    %1297 = vmatpush1.bf16.msra.mxu0 0
    %1298 = vmatprep.subr.bf16.mxu0 0
    %1299 = vmatpush1.bf16.msra.mxu0 0
    %1300 = vmatprep.subr.bf16.mxu0 0
    %1301 = vmatpush1.bf16.msra.mxu0 0
    %1302 = vmatprep.subr.bf16.mxu0 0
    %1303 = vmatpush1.bf16.msra.mxu0 0
    %1304 = vmatprep.subr.bf16.mxu0 0
    %1305 = vmatpush1.bf16.msra.mxu0 0
    %1306 = vmatprep.subr.bf16.mxu0 0
    %1307 = vmatpush1.bf16.msra.mxu0 0
    %1308 = vmatprep.subr.bf16.mxu0 0
    %1309 = vmatpush1.bf16.msra.mxu0 0
    %1310 = vmatprep.subr.bf16.mxu0 0
    %1311 = vmatpush1.bf16.msra.mxu0 0
    %1312 = vmatprep.mubr.bf16.mxu0 0
    %1313 = vmatmul.mubr.bf16.gmra.mrb[0].mxu0 %v1279
    %v1314 = vpop.f32.mrb[0].mxu0
    %v1315 = vadd.f32 0.0, %v1314
    %v1316 = vpop.f32.mrb[0].mxu0
    %v1317 = vadd.f32 0.0, %v1316
    %v1318 = vpop.f32.mrb[0].mxu0
    %v1319 = vpop.f32.mrb[0].mxu0
    %1320 = vdwg.mxu0
    %1321 = vmatprep.subr.bf16.mxu0 %v639
    %1322 = vmatpush1.bf16.msra.mxu0 %v638
    %1323 = vmatprep.subr.bf16.mxu0 %v643
    %1324 = vmatpush1.bf16.msra.mxu0 %v642
    %1325 = vmatprep.subr.bf16.mxu0 %v647
    %1326 = vmatpush1.bf16.msra.mxu0 %v646
    %1327 = vmatprep.subr.bf16.mxu0 %v651
    %1328 = vmatpush1.bf16.msra.mxu0 %v650
    %1329 = vmatprep.subr.bf16.mxu0 %v655
    %1330 = vmatpush1.bf16.msra.mxu0 %v654
    %1331 = vmatprep.subr.bf16.mxu0 %v659
    %1332 = vmatpush1.bf16.msra.mxu0 %v658
    %1333 = vmatprep.subr.bf16.mxu0 %v663
    %1334 = vmatpush1.bf16.msra.mxu0 %v662
    %1335 = vmatprep.subr.bf16.mxu0 %v667
    %1336 = vmatpush1.bf16.msra.mxu0 %v666
    %1337 = vmatprep.subr.bf16.mxu0 0
    %1338 = vmatpush1.bf16.msra.mxu0 0
    %1339 = vmatprep.subr.bf16.mxu0 0
    %1340 = vmatpush1.bf16.msra.mxu0 0
    %1341 = vmatprep.subr.bf16.mxu0 0
    %1342 = vmatpush1.bf16.msra.mxu0 0
    %1343 = vmatprep.subr.bf16.mxu0 0
    %1344 = vmatpush1.bf16.msra.mxu0 0
    %1345 = vmatprep.subr.bf16.mxu0 0
    %1346 = vmatpush1.bf16.msra.mxu0 0
    %1347 = vmatprep.subr.bf16.mxu0 0
    %1348 = vmatpush1.bf16.msra.mxu0 0
    %1349 = vmatprep.subr.bf16.mxu0 0
    %1350 = vmatpush1.bf16.msra.mxu0 0
    %1351 = vmatprep.subr.bf16.mxu0 0
    %1352 = vmatpush1.bf16.msra.mxu0 0
    %1353 = vmatprep.mubr.bf16.mxu0 0
    %1354 = vmatmul.mubr.bf16.gmra.mrb[0].mxu0 %v1279
    %v1355 = vpop.f32.mrb[0].mxu0
    %v1356 = vadd.f32 0.0, %v1355
    %v1357 = vpop.f32.mrb[0].mxu0
    %v1358 = vadd.f32 0.0, %v1357
    %v1359 = vpop.f32.mrb[0].mxu0
    %v1360 = vpop.f32.mrb[0].mxu0
    %1361 = vdwg.mxu0
    %v1362 = vadd.f32 %v1275, %v1315
    %v1363 = vadd.f32 %v1276, %v1317
    %v1364 = vadd.f32 %v1277, %v1356
    %v1365 = vadd.f32 %v1278, %v1358
    %v1366 = vxor.u32 %v1362, 2147483648
    %v1367 = vmul.f32 %v1366, 1.442695
    %v1368 = vpow.pop %v1367
    %v1369 = vadd.f32 %v1368, 1.0
    %v1370 = vrcp.pop %v1369
    %v1371 = vmul.f32 1.0, %v1370
    %v1372 = vxor.u32 %v1363, 2147483648
    %v1373 = vmul.f32 %v1372, 1.442695
    %v1374 = vpow.pop %v1373
    %v1375 = vadd.f32 %v1374, 1.0
    %v1376 = vrcp.pop %v1375
    %v1377 = vmul.f32 1.0, %v1376
    %v1378 = vtanh.pop %v1364
    %v1379 = vxor.u32 %v1365, 2147483648
    %v1380 = vmul.f32 %v1379, 1.442695
    %v1381 = vpow.pop %v1380
    %v1382 = vadd.f32 %v1381, 1.0
    %v1383 = vrcp.pop %v1382
    %v1384 = vmul.f32 1.0, %v1383
    %v1385 = vmul.f32 %v1377, %v1271
    %v1386 = vmul.f32 %v1371, %v1378
    %v1387 = vadd.f32 %v1385, %v1386
    %v1388 = vtanh.pop %v1387
    %v1389 = vmul.f32 %v1384, %v1388
    %s1390 = scalar_lea.vmem [#allocation2], 192
    %v1391 = vld [vmem:[%s1390] sm:$0xff]
    %v1392 = vld [vmem:[%s1390 + $0x8] sm:$0xff]
    %v1393 = vld [vmem:[%s1390 + $0x10] sm:$0xff]
    %v1394 = vld [vmem:[%s1390 + $0x18] sm:$0xff]
    %v1395 = vpack.c.bf16 %v1389, %v1389
    %1396 = vmatprep.subr.bf16.mxu0 %v637
    %1397 = vmatpush1.bf16.msra.mxu0 %v636
    %1398 = vmatprep.subr.bf16.mxu0 %v641
    %1399 = vmatpush1.bf16.msra.mxu0 %v640
    %1400 = vmatprep.subr.bf16.mxu0 %v645
    %1401 = vmatpush1.bf16.msra.mxu0 %v644
    %1402 = vmatprep.subr.bf16.mxu0 %v649
    %1403 = vmatpush1.bf16.msra.mxu0 %v648
    %1404 = vmatprep.subr.bf16.mxu0 %v653
    %1405 = vmatpush1.bf16.msra.mxu0 %v652
    %1406 = vmatprep.subr.bf16.mxu0 %v657
    %1407 = vmatpush1.bf16.msra.mxu0 %v656
    %1408 = vmatprep.subr.bf16.mxu0 %v661
    %1409 = vmatpush1.bf16.msra.mxu0 %v660
    %1410 = vmatprep.subr.bf16.mxu0 %v665
    %1411 = vmatpush1.bf16.msra.mxu0 %v664
    %1412 = vmatprep.subr.bf16.mxu0 0
    %1413 = vmatpush1.bf16.msra.mxu0 0
    %1414 = vmatprep.subr.bf16.mxu0 0
    %1415 = vmatpush1.bf16.msra.mxu0 0
    %1416 = vmatprep.subr.bf16.mxu0 0
    %1417 = vmatpush1.bf16.msra.mxu0 0
    %1418 = vmatprep.subr.bf16.mxu0 0
    %1419 = vmatpush1.bf16.msra.mxu0 0
    %1420 = vmatprep.subr.bf16.mxu0 0
    %1421 = vmatpush1.bf16.msra.mxu0 0
    %1422 = vmatprep.subr.bf16.mxu0 0
    %1423 = vmatpush1.bf16.msra.mxu0 0
    %1424 = vmatprep.subr.bf16.mxu0 0
    %1425 = vmatpush1.bf16.msra.mxu0 0
    %1426 = vmatprep.subr.bf16.mxu0 0
    %1427 = vmatpush1.bf16.msra.mxu0 0
    %1428 = vmatprep.mubr.bf16.mxu0 0
    %1429 = vmatmul.mubr.bf16.gmra.mrb[0].mxu0 %v1395
    %v1430 = vpop.f32.mrb[0].mxu0
    %v1431 = vadd.f32 0.0, %v1430
    %v1432 = vpop.f32.mrb[0].mxu0
    %v1433 = vadd.f32 0.0, %v1432
    %v1434 = vpop.f32.mrb[0].mxu0
    %v1435 = vpop.f32.mrb[0].mxu0
    %1436 = vdwg.mxu0
    %1437 = vmatprep.subr.bf16.mxu0 %v639
    %1438 = vmatpush1.bf16.msra.mxu0 %v638
    %1439 = vmatprep.subr.bf16.mxu0 %v643
    %1440 = vmatpush1.bf16.msra.mxu0 %v642
    %1441 = vmatprep.subr.bf16.mxu0 %v647
    %1442 = vmatpush1.bf16.msra.mxu0 %v646
    %1443 = vmatprep.subr.bf16.mxu0 %v651
    %1444 = vmatpush1.bf16.msra.mxu0 %v650
    %1445 = vmatprep.subr.bf16.mxu0 %v655
    %1446 = vmatpush1.bf16.msra.mxu0 %v654
    %1447 = vmatprep.subr.bf16.mxu0 %v659
    %1448 = vmatpush1.bf16.msra.mxu0 %v658
    %1449 = vmatprep.subr.bf16.mxu0 %v663
    %1450 = vmatpush1.bf16.msra.mxu0 %v662
    %1451 = vmatprep.subr.bf16.mxu0 %v667
    %1452 = vmatpush1.bf16.msra.mxu0 %v666
    %1453 = vmatprep.subr.bf16.mxu0 0
    %1454 = vmatpush1.bf16.msra.mxu0 0
    %1455 = vmatprep.subr.bf16.mxu0 0
    %1456 = vmatpush1.bf16.msra.mxu0 0
    %1457 = vmatprep.subr.bf16.mxu0 0
    %1458 = vmatpush1.bf16.msra.mxu0 0
    %1459 = vmatprep.subr.bf16.mxu0 0
    %1460 = vmatpush1.bf16.msra.mxu0 0
    %1461 = vmatprep.subr.bf16.mxu0 0
    %1462 = vmatpush1.bf16.msra.mxu0 0
    %1463 = vmatprep.subr.bf16.mxu0 0
    %1464 = vmatpush1.bf16.msra.mxu0 0
    %1465 = vmatprep.subr.bf16.mxu0 0
    %1466 = vmatpush1.bf16.msra.mxu0 0
    %1467 = vmatprep.subr.bf16.mxu0 0
    %1468 = vmatpush1.bf16.msra.mxu0 0
    %1469 = vmatprep.mubr.bf16.mxu0 0
    %1470 = vmatmul.mubr.bf16.gmra.mrb[0].mxu0 %v1395
    %v1471 = vpop.f32.mrb[0].mxu0
    %v1472 = vadd.f32 0.0, %v1471
    %v1473 = vpop.f32.mrb[0].mxu0
    %v1474 = vadd.f32 0.0, %v1473
    %v1475 = vpop.f32.mrb[0].mxu0
    %v1476 = vpop.f32.mrb[0].mxu0
    %1477 = vdwg.mxu0
    %v1478 = vadd.f32 %v1391, %v1431
    %v1479 = vadd.f32 %v1392, %v1433
    %v1480 = vadd.f32 %v1393, %v1472
    %v1481 = vadd.f32 %v1394, %v1474
    %v1482 = vxor.u32 %v1478, 2147483648
    %v1483 = vmul.f32 %v1482, 1.442695
    %v1484 = vpow.pop %v1483
    %v1485 = vadd.f32 %v1484, 1.0
    %v1486 = vrcp.pop %v1485
    %v1487 = vmul.f32 1.0, %v1486
    %v1488 = vxor.u32 %v1479, 2147483648
    %v1489 = vmul.f32 %v1488, 1.442695
    %v1490 = vpow.pop %v1489
    %v1491 = vadd.f32 %v1490, 1.0
    %v1492 = vrcp.pop %v1491
    %v1493 = vmul.f32 1.0, %v1492
    %v1494 = vtanh.pop %v1480
    %v1495 = vxor.u32 %v1481, 2147483648
    %v1496 = vmul.f32 %v1495, 1.442695
    %v1497 = vpow.pop %v1496
    %v1498 = vadd.f32 %v1497, 1.0
    %v1499 = vrcp.pop %v1498
    %v1500 = vmul.f32 1.0, %v1499
    %v1501 = vmul.f32 %v1493, %v1387
    %v1502 = vmul.f32 %v1487, %v1494
    %v1503 = vadd.f32 %v1501, %v1502
    %v1504 = vtanh.pop %v1503
    %v1505 = vmul.f32 %v1500, %v1504
    %s1506 = scalar_lea.vmem [#allocation2], 224
    %v1507 = vld [vmem:[%s1506] sm:$0xff]
    %v1508 = vld [vmem:[%s1506 + $0x8] sm:$0xff]
    %v1509 = vld [vmem:[%s1506 + $0x10] sm:$0xff]
    %v1510 = vld [vmem:[%s1506 + $0x18] sm:$0xff]
    %v1511 = vpack.c.bf16 %v1505, %v1505
    %1512 = vmatprep.subr.bf16.mxu0 %v637
    %1513 = vmatpush1.bf16.msra.mxu0 %v636
    %1514 = vmatprep.subr.bf16.mxu0 %v641
    %1515 = vmatpush1.bf16.msra.mxu0 %v640
    %1516 = vmatprep.subr.bf16.mxu0 %v645
    %1517 = vmatpush1.bf16.msra.mxu0 %v644
    %1518 = vmatprep.subr.bf16.mxu0 %v649
    %1519 = vmatpush1.bf16.msra.mxu0 %v648
    %1520 = vmatprep.subr.bf16.mxu0 %v653
    %1521 = vmatpush1.bf16.msra.mxu0 %v652
    %1522 = vmatprep.subr.bf16.mxu0 %v657
    %1523 = vmatpush1.bf16.msra.mxu0 %v656
    %1524 = vmatprep.subr.bf16.mxu0 %v661
    %1525 = vmatpush1.bf16.msra.mxu0 %v660
    %1526 = vmatprep.subr.bf16.mxu0 %v665
    %1527 = vmatpush1.bf16.msra.mxu0 %v664
    %1528 = vmatprep.subr.bf16.mxu0 0
    %1529 = vmatpush1.bf16.msra.mxu0 0
    %1530 = vmatprep.subr.bf16.mxu0 0
    %1531 = vmatpush1.bf16.msra.mxu0 0
    %1532 = vmatprep.subr.bf16.mxu0 0
    %1533 = vmatpush1.bf16.msra.mxu0 0
    %1534 = vmatprep.subr.bf16.mxu0 0
    %1535 = vmatpush1.bf16.msra.mxu0 0
    %1536 = vmatprep.subr.bf16.mxu0 0
    %1537 = vmatpush1.bf16.msra.mxu0 0
    %1538 = vmatprep.subr.bf16.mxu0 0
    %1539 = vmatpush1.bf16.msra.mxu0 0
    %1540 = vmatprep.subr.bf16.mxu0 0
    %1541 = vmatpush1.bf16.msra.mxu0 0
    %1542 = vmatprep.subr.bf16.mxu0 0
    %1543 = vmatpush1.bf16.msra.mxu0 0
    %1544 = vmatprep.mubr.bf16.mxu0 0
    %1545 = vmatmul.mubr.bf16.gmra.mrb[0].mxu0 %v1511
    %v1546 = vpop.f32.mrb[0].mxu0
    %v1547 = vadd.f32 0.0, %v1546
    %v1548 = vpop.f32.mrb[0].mxu0
    %v1549 = vadd.f32 0.0, %v1548
    %v1550 = vpop.f32.mrb[0].mxu0
    %v1551 = vpop.f32.mrb[0].mxu0
    %1552 = vdwg.mxu0
    %1553 = vmatprep.subr.bf16.mxu0 %v639
    %1554 = vmatpush1.bf16.msra.mxu0 %v638
    %1555 = vmatprep.subr.bf16.mxu0 %v643
    %1556 = vmatpush1.bf16.msra.mxu0 %v642
    %1557 = vmatprep.subr.bf16.mxu0 %v647
    %1558 = vmatpush1.bf16.msra.mxu0 %v646
    %1559 = vmatprep.subr.bf16.mxu0 %v651
    %1560 = vmatpush1.bf16.msra.mxu0 %v650
    %1561 = vmatprep.subr.bf16.mxu0 %v655
    %1562 = vmatpush1.bf16.msra.mxu0 %v654
    %1563 = vmatprep.subr.bf16.mxu0 %v659
    %1564 = vmatpush1.bf16.msra.mxu0 %v658
    %1565 = vmatprep.subr.bf16.mxu0 %v663
    %1566 = vmatpush1.bf16.msra.mxu0 %v662
    %1567 = vmatprep.subr.bf16.mxu0 %v667
    %1568 = vmatpush1.bf16.msra.mxu0 %v666
    %1569 = vmatprep.subr.bf16.mxu0 0
    %1570 = vmatpush1.bf16.msra.mxu0 0
    %1571 = vmatprep.subr.bf16.mxu0 0
    %1572 = vmatpush1.bf16.msra.mxu0 0
    %1573 = vmatprep.subr.bf16.mxu0 0
    %1574 = vmatpush1.bf16.msra.mxu0 0
    %1575 = vmatprep.subr.bf16.mxu0 0
    %1576 = vmatpush1.bf16.msra.mxu0 0
    %1577 = vmatprep.subr.bf16.mxu0 0
    %1578 = vmatpush1.bf16.msra.mxu0 0
    %1579 = vmatprep.subr.bf16.mxu0 0
    %1580 = vmatpush1.bf16.msra.mxu0 0
    %1581 = vmatprep.subr.bf16.mxu0 0
    %1582 = vmatpush1.bf16.msra.mxu0 0
    %1583 = vmatprep.subr.bf16.mxu0 0
    %1584 = vmatpush1.bf16.msra.mxu0 0
    %1585 = vmatprep.mubr.bf16.mxu0 0
    %1586 = vmatmul.mubr.bf16.gmra.mrb[0].mxu0 %v1511
    %v1587 = vpop.f32.mrb[0].mxu0
    %v1588 = vadd.f32 0.0, %v1587
    %v1589 = vpop.f32.mrb[0].mxu0
    %v1590 = vadd.f32 0.0, %v1589
    %v1591 = vpop.f32.mrb[0].mxu0
    %v1592 = vpop.f32.mrb[0].mxu0
    %1593 = vdwg.mxu0
    %v1594 = vadd.f32 %v1507, %v1547
    %v1595 = vadd.f32 %v1508, %v1549
    %v1596 = vadd.f32 %v1509, %v1588
    %v1597 = vadd.f32 %v1510, %v1590
    %v1598 = vxor.u32 %v1594, 2147483648
    %v1599 = vmul.f32 %v1598, 1.442695
    %v1600 = vpow.pop %v1599
    %v1601 = vadd.f32 %v1600, 1.0
    %v1602 = vrcp.pop %v1601
    %v1603 = vmul.f32 1.0, %v1602
    %v1604 = vxor.u32 %v1595, 2147483648
    %v1605 = vmul.f32 %v1604, 1.442695
    %v1606 = vpow.pop %v1605
    %v1607 = vadd.f32 %v1606, 1.0
    %v1608 = vrcp.pop %v1607
    %v1609 = vmul.f32 1.0, %v1608
    %v1610 = vtanh.pop %v1596
    %v1611 = vxor.u32 %v1597, 2147483648
    %v1612 = vmul.f32 %v1611, 1.442695
    %v1613 = vpow.pop %v1612
    %v1614 = vadd.f32 %v1613, 1.0
    %v1615 = vrcp.pop %v1614
    %v1616 = vmul.f32 1.0, %v1615
    %v1617 = vmul.f32 %v1609, %v1503
    %v1618 = vmul.f32 %v1603, %v1610
    %v1619 = vadd.f32 %v1617, %v1618
    %v1620 = vtanh.pop %v1619
    %v1621 = vmul.f32 %v1616, %v1620
    %v1622 = vpack.c.bf16 %v1621, %v1621
    %v1623 = vld [vmem:[#allocation9] sm:$0xf]
    %v1624 = vld [vmem:[#allocation9 + $0x4] sm:$0xf]
    %v1625 = vld [vmem:[#allocation9 + $0x8] sm:$0xf]
    %v1626 = vld [vmem:[#allocation9 + $0xc] sm:$0xf]
    %v1627 = vld [vmem:[#allocation9 + $0x10] sm:$0xf]
    %v1628 = vld [vmem:[#allocation9 + $0x14] sm:$0xf]
    %v1629 = vld [vmem:[#allocation9 + $0x18] sm:$0xf]
    %v1630 = vld [vmem:[#allocation9 + $0x1c] sm:$0xf]
    %v1631 = vld [vmem:[#allocation9 + $0x20] sm:$0xf]
    %v1632 = vld [vmem:[#allocation9 + $0x24] sm:$0xf]
    %v1633 = vld [vmem:[#allocation9 + $0x28] sm:$0xf]
    %v1634 = vld [vmem:[#allocation9 + $0x2c] sm:$0xf]
    %v1635 = vld [vmem:[#allocation9 + $0x30] sm:$0xf]
    %v1636 = vld [vmem:[#allocation9 + $0x34] sm:$0xf]
    %v1637 = vld [vmem:[#allocation9 + $0x38] sm:$0xf]
    %v1638 = vld [vmem:[#allocation9 + $0x3c] sm:$0xf]
    %v1639 = vld [vmem:[%s5] sm:$0x1]
    %v1641 = vlaneseq
    %v1642 = vshrl.u32 %v1641, 7
    %v1643 = vsub.s32 0, %v1642
    %v1644 = vrot.slane %v1639, %v1643
    %v1662 = vunpack.c.l.b16 %v1623
    %v1663 = vunpack.c.l.b16 %v1624
    %v1664 = vunpack.c.l.b16 %v1625
    %v1665 = vunpack.c.l.b16 %v1626
    %v1666 = vunpack.c.l.b16 %v1627
    %v1667 = vunpack.c.l.b16 %v1628
    %v1668 = vunpack.c.l.b16 %v1629
    %v1669 = vunpack.c.l.b16 %v1630
    %v1670 = vunpack.c.l.b16 %v1631
    %v1671 = vunpack.c.l.b16 %v1632
    %v1672 = vunpack.c.l.b16 %v1633
    %v1673 = vunpack.c.l.b16 %v1634
    %v1674 = vunpack.c.l.b16 %v1635
    %v1675 = vunpack.c.l.b16 %v1636
    %v1676 = vunpack.c.l.b16 %v1637
    %v1677 = vunpack.c.l.b16 %v1638
    %v1678 = vpack.c.b16 %v1663, %v1662
    %v1679 = vpack.c.b16 %v1665, %v1664
    %v1680 = vpack.c.b16 %v1667, %v1666
    %v1681 = vpack.c.b16 %v1669, %v1668
    %v1682 = vpack.c.b16 %v1671, %v1670
    %v1683 = vpack.c.b16 %v1673, %v1672
    %v1684 = vpack.c.b16 %v1675, %v1674
    %v1685 = vpack.c.b16 %v1677, %v1676
    %1694 = vmatprep.subr.bf16.mxu0 0
    %1695 = vmatpush1.bf16.msra.mxu0 %v1678
    %1696 = vmatprep.subr.bf16.mxu0 0
    %1697 = vmatpush1.bf16.msra.mxu0 %v1679
    %1698 = vmatprep.subr.bf16.mxu0 0
    %1699 = vmatpush1.bf16.msra.mxu0 %v1680
    %1700 = vmatprep.subr.bf16.mxu0 0
    %1701 = vmatpush1.bf16.msra.mxu0 %v1681
    %1702 = vmatprep.subr.bf16.mxu0 0
    %1703 = vmatpush1.bf16.msra.mxu0 %v1682
    %1704 = vmatprep.subr.bf16.mxu0 0
    %1705 = vmatpush1.bf16.msra.mxu0 %v1683
    %1706 = vmatprep.subr.bf16.mxu0 0
    %1707 = vmatpush1.bf16.msra.mxu0 %v1684
    %1708 = vmatprep.subr.bf16.mxu0 0
    %1709 = vmatpush1.bf16.msra.mxu0 %v1685
    %1710 = vmatprep.subr.bf16.mxu0 0
    %1711 = vmatpush1.bf16.msra.mxu0 0
    %1712 = vmatprep.subr.bf16.mxu0 0
    %1713 = vmatpush1.bf16.msra.mxu0 0
    %1714 = vmatprep.subr.bf16.mxu0 0
    %1715 = vmatpush1.bf16.msra.mxu0 0
    %1716 = vmatprep.subr.bf16.mxu0 0
    %1717 = vmatpush1.bf16.msra.mxu0 0
    %1718 = vmatprep.subr.bf16.mxu0 0
    %1719 = vmatpush1.bf16.msra.mxu0 0
    %1720 = vmatprep.subr.bf16.mxu0 0
    %1721 = vmatpush1.bf16.msra.mxu0 0
    %1722 = vmatprep.subr.bf16.mxu0 0
    %1723 = vmatpush1.bf16.msra.mxu0 0
    %1724 = vmatprep.subr.bf16.mxu0 0
    %1725 = vmatpush1.bf16.msra.mxu0 0
    %1726 = vmatprep.mubr.bf16.mxu0 0
    %1727 = vmatmul.mubr.bf16.gmra.mrb[0].mxu0 %v1622
    %v1728 = vpop.f32.mrb[0].mxu0
    %v1729 = vadd.f32 %v1644, %v1728
    %v1730 = vpop.f32.mrb[0].mxu0
    %v1731 = vpop.f32.mrb[0].mxu0
    %v1732 = vpop.f32.mrb[0].mxu0
    %1733 = vdwg.mxu0
    %1734 = vst [vmem:[#allocation11] sm:$0xff] %v1729
    // Predicated region
    $region42: #{tpu_custom_call.1} parent=1 // pred_check
      _
    $region43: #{tpu_custom_call.1} parent=1 // pred_check_branch
      %1736 = sbr.rel (0) target = $region45
    $region44: #{tpu_custom_call.1} parent=1 // pred_region
      %s1738 = ssub.s32 128, 128
      %1739 = vsyncadd [#allocation5], %s1738
      %s1741 = sshll.u32 [#allocation11], 4
      %s1742 = int_to_ptr.vmem [resolvable:$true] %s1741
      %1744 = dma.vmem_to_hbm [thread:$0]  %s1742, 128, %s6, [#allocation5]
    $region45: #{tpu_custom_call.1} parent=1 // pred_fallthru
      _
    // Predicated region
    $region46: #{tpu_custom_call.1} parent=1 // pred_check
      _
    $region47: #{tpu_custom_call.1} parent=1 // pred_check_branch
      %1746 = sbr.rel (0) target = $region49
    $region48: #{tpu_custom_call.1} parent=1 // pred_region
      %1747 = dma.done [#allocation5], 128
    $region49: #{tpu_custom_call.1} parent=1 // pred_fallthru
      _
    %1748 = vsyncpa [#allocation4], 1
    %1749 = vsyncpa [#allocation7], 1
    %1750 = vsyncpa [#allocation10], 1
    %1751 = vsyncpa [#allocation5], 1

</llo_original>
